<compile_context>
chip_gen: v6e
topology: v6e:2x2x1
jax: 0.10.0
libtpu: 0.0.40
codegen_flags: <defaults>
</compile_context>

<pallas_src>
import math
from functools import partial

import jax
import jax.numpy as jnp
from jax import lax
from jax.experimental import pallas as pl
from jax.experimental.pallas import tpu as pltpu

_NEG_INF = -1e30


def _round_up(x, m):
    return (x + m - 1) // m * m


def _device_kind():
    try:
        return jax.devices()[0].device_kind.lower()
    except Exception:
        return ""


def _vmem_capacity_bytes():
    # Prefer the real hardware query; fall back to a device-kind heuristic,
    # conservative (64 MiB) for v7x / unknown chips.
    try:
        cap = getattr(pltpu.get_tpu_info(), "vmem_capacity_bytes", None)
        if cap:
            return int(cap)
    except Exception:
        pass
    kind = _device_kind()
    if any(t in kind for t in ("v4", "v5", "v6")):
        return 128 * 1024 * 1024
    return 64 * 1024 * 1024


def _preferred_kv_tile():
    # v6e/v7x MXUs are 256x256; v5e (and older) are 128x128.
    kind = _device_kind()
    if any(t in kind for t in ("v2", "v3", "v4", "v5")):
        return 128
    return 256


def _pick_heads_per_block(b, ch_pad, t_pad, kv_tile, op_bytes, out_bytes,
                          vmem_budget, max_heads=8):
    # Honest per-head VMEM accounting for one grid step: double-buffered
    # q/k/v/out blocks + f32 PV accumulator + m/l scratch (lane-padded to 128)
    # + ~5 f32 (Tq, Tk) softmax temporaries (logits, mask, exp, sum, cast).
    per_head = (2 * t_pad * ch_pad * op_bytes        # q block (x2 buffers)
                + 2 * ch_pad * kv_tile * op_bytes    # k block
                + 2 * kv_tile * ch_pad * op_bytes    # v block
                + 2 * t_pad * ch_pad * out_bytes     # out block
                + t_pad * ch_pad * 4                 # f32 PV accumulator
                + 2 * t_pad * 128 * 4                # m / l scratch (lane-padded)
                + 5 * t_pad * kv_tile * 4)           # softmax temporaries
    max_bh = max(1, min(max_heads, vmem_budget // per_head))
    # Keep >= 2 steps on the parallel (head) axis so both v7x TensorCores get
    # work and the software pipeline has steps to overlap.
    min_blocks = 2 if b >= 2 else 1
    bh = 1
    for d in range(1, b + 1):
        if b % d == 0 and d <= max_bh and b // d >= min_blocks:
            bh = d
    return bh


def _flash_attn_kernel(q_ref, k_ref, v_ref, o_ref, m_ref, l_ref, acc_ref, *,
                       scale, valid_t, kv_tile, mask_keys):
    kv = pl.program_id(1)

    @pl.when(kv == 0)
    def _():
        m_ref[...] = jnp.full_like(m_ref, _NEG_INF)
        l_ref[...] = jnp.zeros_like(l_ref)
        acc_ref[...] = jnp.zeros_like(acc_ref)

    q = q_ref[...]                     # (bh, Tq, Cp)  MXU operand dtype
    k = k_ref[...]                     # (bh, Cp, Tk)
    v = v_ref[...]                     # (bh, Tk, Cp)

    # logits[b,t,s] = sum_c q[b,t,c] * k[b,c,s] — canonical MXU form
    # (contraction on q's lanes / k's sublanes), f32 accumulation. The legacy
    # two-sided ch**-0.25 scaling is folded into a single f32 multiply on the
    # logits (better precision with bf16 operands; free VPU filler under the
    # EUP-bound softmax at small head dims).
    s = jnp.einsum('btc,bcs->bts', q, k, preferred_element_type=jnp.float32)
    s = s * scale
    if mask_keys:
        col = lax.broadcasted_iota(jnp.int32, s.shape, dimension=2)
        s = jnp.where(col + kv * kv_tile < valid_t, s, _NEG_INF)

    # Online (flash) softmax in f32 (matches the PyTorch float() softmax).
    m_prev = m_ref[...]
    m_new = jnp.maximum(m_prev, jnp.max(s, axis=-1, keepdims=True))
    alpha = jnp.exp(m_prev - m_new)
    p = jnp.exp(s - m_new)
    l_ref[...] = alpha * l_ref[...] + jnp.sum(p, axis=-1, keepdims=True)
    # PV matmul: weights cast back to the MXU operand dtype, f32 accumulation,
    # contraction on p's lanes / v's sublanes — canonical, no transpose.
    acc_ref[...] = alpha * acc_ref[...] + jnp.einsum(
        'bts,bsc->btc', p.astype(v.dtype), v,
        preferred_element_type=jnp.float32)
    m_ref[...] = m_new

    @pl.when(kv == pl.num_programs(1) - 1)
    def _():
        inv = pl.reciprocal(l_ref[...], approx=True)   # EUP, not a VALU divide
        o_ref[...] = (acc_ref[...] * inv).astype(o_ref.dtype)


def qkv_attention_legacy(qkv, n_heads, *, use_bf16_matmul=True):
    """qkv: [N, H*3*C, T] -> [N, H*C, T], matching QKVAttentionLegacy.forward."""
    bs, width, length = qkv.shape
    assert width % (3 * n_heads) == 0
    ch = width // (3 * n_heads)
    b = bs * n_heads
    out_dtype = qkv.dtype

    # MXU operand dtype: bf16 matmuls (with f32 accumulation) for f32 inputs —
    # the v6e/v7x MXU is a native bf16 array; f32 matmuls run multi-pass.
    if use_bf16_matmul and qkv.dtype == jnp.float32:
        op_dtype = jnp.bfloat16
    else:
        op_dtype = qkv.dtype
    op_bytes = jnp.dtype(op_dtype).itemsize
    out_bytes = jnp.dtype(out_dtype).itemsize

    # Channel padded to the sublane pack; T padded to a whole number of KV
    # tiles (lane-dense, and no fully-padded KV block is ever visited).
    sublane = max(8, 32 // op_bytes)
    ch_pad = _round_up(ch, sublane)
    kv_tile = min(_preferred_kv_tile(), _round_up(length, 128))
    t_pad = _round_up(length, kv_tile)
    num_kv = t_pad // kv_tile

    # Split q/k/v and lay them out for canonical MXU matmuls:
    #   q, v token-major (B, Tp, Cp); k channel-major (B, Cp, Tp).
    # TODO(synk): in a full model, fuse this pad/cast/transpose into the qkv
    # projection producer instead of an extra HBM round trip (mem-bound v5e).
    x = qkv.reshape(b, 3, ch, length)
    x = jnp.pad(x, ((0, 0), (0, 0), (0, ch_pad - ch),
                    (0, t_pad - length))).astype(op_dtype)
    q_t = x[:, 0].transpose(0, 2, 1)     # (b, t_pad, ch_pad)
    k = x[:, 1]                          # (b, ch_pad, t_pad)
    v_t = x[:, 2].transpose(0, 2, 1)     # (b, t_pad, ch_pad)

    vmem_cap = _vmem_capacity_bytes()
    bh = _pick_heads_per_block(b, ch_pad, t_pad, kv_tile, op_bytes, out_bytes,
                               vmem_budget=int(0.65 * vmem_cap))
    grid = (b // bh, num_kv)
    # TODO(synk): for extremely long sequences (t_pad in the tens of thousands)
    # the resident (bh, Tq, Cp) q/out/acc blocks grow large; add a query-tile
    # grid axis as well.

    scale = 1.0 / math.sqrt(ch)          # == (ch**-0.25)**2 from the reference

    kernel = partial(_flash_attn_kernel, scale=scale, valid_t=length,
                     kv_tile=kv_tile, mask_keys=(t_pad != length))

    flops = 4 * b * ch_pad * t_pad * t_pad              # QK^T + PV matmuls
    transcendentals = b * t_pad * t_pad                 # softmax exp
    bytes_accessed = (3 * b * ch_pad * t_pad * op_bytes
                      + b * ch_pad * t_pad * out_bytes)

    out_t = pl.pallas_call(
        kernel,
        out_shape=jax.ShapeDtypeStruct((b, t_pad, ch_pad), out_dtype),
        grid_spec=pltpu.PrefetchScalarGridSpec(
            num_scalar_prefetch=0,
            grid=grid,
            in_specs=[
                pl.BlockSpec((bh, t_pad, ch_pad), lambda i, j: (i, 0, 0)),    # q
                pl.BlockSpec((bh, ch_pad, kv_tile), lambda i, j: (i, 0, j)),  # k
                pl.BlockSpec((bh, kv_tile, ch_pad), lambda i, j: (i, j, 0)),  # v
            ],
            out_specs=pl.BlockSpec((bh, t_pad, ch_pad), lambda i, j: (i, 0, 0)),
            scratch_shapes=[
                pltpu.VMEM((bh, t_pad, 1), jnp.float32),        # running max m
                pltpu.VMEM((bh, t_pad, 1), jnp.float32),        # running sum l
                pltpu.VMEM((bh, t_pad, ch_pad), jnp.float32),   # f32 PV acc
            ],
        ),
        compiler_params=pltpu.CompilerParams(
            dimension_semantics=("parallel", "arbitrary"),
            vmem_limit_bytes=min(int(0.75 * vmem_cap), 128 * 1024 * 1024),
        ),
        cost_estimate=pl.CostEstimate(
            flops=flops,
            transcendentals=transcendentals,
            bytes_accessed=bytes_accessed,
        ),
    )(q_t, k, v_t)

    out = out_t[:, :length, :ch].transpose(0, 2, 1)
    return out.reshape(bs, n_heads * ch, length)


def _reference(qkv, n_heads):
    # Pure-JAX reference mirroring the PyTorch forward.
    bs, width, length = qkv.shape
    ch = width // (3 * n_heads)
    x = qkv.reshape(bs * n_heads, 3 * ch, length)
    q, k, v = x[:, :ch], x[:, ch:2 * ch], x[:, 2 * ch:]
    scale = 1.0 / math.sqrt(math.sqrt(ch))
    weight = jnp.einsum('bct,bcs->bts', q * scale, k * scale)
    weight = jax.nn.softmax(weight.astype(jnp.float32), axis=-1).astype(weight.dtype)
    a = jnp.einsum('bts,bcs->bct', weight, v)
    return a.reshape(bs, -1, length)


if __name__ == "__main__":
    key = jax.random.PRNGKey(0)

    # 1) Aligned shapes — bf16-MXU path (f32 in/out, bf16 matmul operands).
    n_heads, N, C, T = 2, 2, 64, 128
    qkv = jax.random.normal(key, (N, n_heads * 3 * C, T), dtype=jnp.float32)
    out = qkv_attention_legacy(qkv, n_heads)
    jax.block_until_ready(out)
    ref = _reference(qkv, n_heads)
    assert out.shape == (N, n_heads * C, T)
    assert jnp.allclose(out, ref, atol=2e-2, rtol=2e-2)   # bf16-operand tolerance

    # 2) Unaligned shapes (channel + seq padding, key masking) — exact f32 matmuls.
    n_heads2, N2, C2, T2 = 3, 1, 12, 40
    qkv2 = jax.random.normal(key, (N2, n_heads2 * 3 * C2, T2), dtype=jnp.float32)
    out2 = qkv_attention_legacy(qkv2, n_heads2, use_bf16_matmul=False)
    jax.block_until_ready(out2)
    ref2 = _reference(qkv2, n_heads2)
    assert out2.shape == (N2, n_heads2 * C2, T2)
    assert jnp.allclose(out2, ref2, atol=5e-3, rtol=5e-3)

    # 3) Multi-KV-block path — exercises the online softmax across >= 2 KV tiles.
    n_heads3, N3, C3, T3 = 2, 1, 32, 300
    qkv3 = jax.random.normal(key, (N3, n_heads3 * 3 * C3, T3), dtype=jnp.float32)
    out3 = qkv_attention_legacy(qkv3, n_heads3)
    jax.block_until_ready(out3)
    ref3 = _reference(qkv3, n_heads3)
    assert out3.shape == (N3, n_heads3 * C3, T3)
    assert jnp.allclose(out3, ref3, atol=2e-2, rtol=2e-2)

    print("KERNEL_OK")
</pallas_src>

<mosaic_0001>
module attributes {stable_mosaic.version = 11 : i64} {
  func.func @_flash_attn_kernel(%arg0: i32, %arg1: i32, %arg2: memref<2x128x64xbf16, #tpu.memory_space<vmem>>, %arg3: memref<2x64x128xbf16, #tpu.memory_space<vmem>>, %arg4: memref<2x128x64xbf16, #tpu.memory_space<vmem>>, %arg5: memref<2x128x64xf32, #tpu.memory_space<vmem>>, %arg6: memref<2x128x1xf32, #tpu.memory_space<vmem>>, %arg7: memref<2x128x1xf32, #tpu.memory_space<vmem>>, %arg8: memref<2x128x64xf32, #tpu.memory_space<vmem>>) attributes {dimension_semantics = [#tpu.dimension_semantics<parallel>, #tpu.dimension_semantics<arbitrary>], iteration_bounds = array<i64: 2, 1>, scalar_prefetch = 0 : i64, scratch_operands = 3 : i64, tpu.core_type = #tpu.core_type<tc>, window_params = [{transform_indices = @transform_0, window_bounds = array<i64: 2, 128, 64>}, {transform_indices = @transform_1, window_bounds = array<i64: 2, 64, 128>}, {transform_indices = @transform_2, window_bounds = array<i64: 2, 128, 64>}, {transform_indices = @transform_3, window_bounds = array<i64: 2, 128, 64>}]} {
    %c0_i32 = arith.constant 0 : i32
    %0 = arith.cmpi eq, %arg1, %c0_i32 : i32
    %1 = arith.extui %0 : i1 to i32
    %c0_i32_0 = arith.constant 0 : i32
    %2 = arith.cmpi ne, %1, %c0_i32_0 : i32
    scf.if %2 {
      %cst_33 = arith.constant -1.000000e+30 : f32
      %35 = vector.broadcast %cst_33 : f32 to vector<2x128x1xf32>
      %c0_34 = arith.constant 0 : index
      %c0_35 = arith.constant 0 : index
      %c0_36 = arith.constant 0 : index
      %36 = vector.load %arg6[%c0_34, %c0_35, %c0_36] : memref<2x128x1xf32, #tpu.memory_space<vmem>>, vector<2x128x1xf32>
      tpu.vector_store %arg6[%c0_34, %c0_35, %c0_36], %35 {strides = array<i32>} : memref<2x128x1xf32, #tpu.memory_space<vmem>>, vector<2x128x1xf32>,
      %cst_37 = arith.constant 0.000000e+00 : f32
      %37 = vector.broadcast %cst_37 : f32 to vector<2x128x1xf32>
      %c0_38 = arith.constant 0 : index
      %c0_39 = arith.constant 0 : index
      %c0_40 = arith.constant 0 : index
      %38 = vector.load %arg7[%c0_38, %c0_39, %c0_40] : memref<2x128x1xf32, #tpu.memory_space<vmem>>, vector<2x128x1xf32>
      tpu.vector_store %arg7[%c0_38, %c0_39, %c0_40], %37 {strides = array<i32>} : memref<2x128x1xf32, #tpu.memory_space<vmem>>, vector<2x128x1xf32>,
      %cst_41 = arith.constant 0.000000e+00 : f32
      %39 = vector.broadcast %cst_41 : f32 to vector<2x128x64xf32>
      %c0_42 = arith.constant 0 : index
      %c0_43 = arith.constant 0 : index
      %c0_44 = arith.constant 0 : index
      %40 = vector.load %arg8[%c0_42, %c0_43, %c0_44] : memref<2x128x64xf32, #tpu.memory_space<vmem>>, vector<2x128x64xf32>
      tpu.vector_store %arg8[%c0_42, %c0_43, %c0_44], %39 {strides = array<i32>} : memref<2x128x64xf32, #tpu.memory_space<vmem>>, vector<2x128x64xf32>,
    } else {
    }
    %c0 = arith.constant 0 : index
    %c0_1 = arith.constant 0 : index
    %c0_2 = arith.constant 0 : index
    %3 = vector.load %arg2[%c0, %c0_1, %c0_2] : memref<2x128x64xbf16, #tpu.memory_space<vmem>>, vector<2x128x64xbf16>
    %c0_3 = arith.constant 0 : index
    %c0_4 = arith.constant 0 : index
    %c0_5 = arith.constant 0 : index
    %4 = vector.load %arg3[%c0_3, %c0_4, %c0_5] : memref<2x64x128xbf16, #tpu.memory_space<vmem>>, vector<2x64x128xbf16>
    %c0_6 = arith.constant 0 : index
    %c0_7 = arith.constant 0 : index
    %c0_8 = arith.constant 0 : index
    %5 = vector.load %arg4[%c0_6, %c0_7, %c0_8] : memref<2x128x64xbf16, #tpu.memory_space<vmem>>, vector<2x128x64xbf16>
    "tpu.trace_start"() <{level = 10 : i32, message = "btc,bcs->bts"}> : () -> ()
    %cst = arith.constant dense<0.000000e+00> : vector<2x128x128xf32>
    %6 = tpu.matmul %3, %4, %cst {dimension_numbers = #tpu.dot_dimension_numbers<[2], [1], [1], [2], [0, 0, 0, 1, 1, 2], [0], [0]>} : vector<2x128x64xbf16>, vector<2x64x128xbf16>, vector<2x128x128xf32> -> vector<2x128x128xf32>
    "tpu.trace_stop"() : () -> ()
    %cst_9 = arith.constant 1.250000e-01 : f32
    %7 = vector.broadcast %cst_9 : f32 to vector<2x128x128xf32>
    %8 = arith.mulf %6, %7 : vector<2x128x128xf32>
    %c0_10 = arith.constant 0 : index
    %c0_11 = arith.constant 0 : index
    %c0_12 = arith.constant 0 : index
    %9 = vector.load %arg6[%c0_10, %c0_11, %c0_12] : memref<2x128x1xf32, #tpu.memory_space<vmem>>, vector<2x128x1xf32>
    %cst_13 = arith.constant dense<0xFF800000> : vector<2x128xf32>
    %10 = vector.multi_reduction <maximumf>, %8, %cst_13 [2] : vector<2x128x128xf32> to vector<2x128xf32>
    %11 = vector.shape_cast %10 : vector<2x128xf32> to vector<2x128x1xf32>
    %12 = arith.maximumf %9, %11 : vector<2x128x1xf32>
    %13 = arith.subf %9, %12 : vector<2x128x1xf32>
    %14 = math.exp %13 : vector<2x128x1xf32>
    %15 = vector.broadcast %12 : vector<2x128x1xf32> to vector<2x128x128xf32>
    %16 = arith.subf %8, %15 : vector<2x128x128xf32>
    %17 = math.exp %16 : vector<2x128x128xf32>
    %c0_14 = arith.constant 0 : index
    %c0_15 = arith.constant 0 : index
    %c0_16 = arith.constant 0 : index
    %18 = vector.load %arg7[%c0_14, %c0_15, %c0_16] : memref<2x128x1xf32, #tpu.memory_space<vmem>>, vector<2x128x1xf32>
    %19 = arith.mulf %14, %18 : vector<2x128x1xf32>
    %cst_17 = arith.constant dense<0.000000e+00> : vector<2x128xf32>
    %20 = vector.multi_reduction <add>, %17, %cst_17 [2] : vector<2x128x128xf32> to vector<2x128xf32>
    %21 = vector.shape_cast %20 : vector<2x128xf32> to vector<2x128x1xf32>
    %22 = arith.addf %19, %21 : vector<2x128x1xf32>
    %c0_18 = arith.constant 0 : index
    %c0_19 = arith.constant 0 : index
    %c0_20 = arith.constant 0 : index
    %23 = vector.load %arg7[%c0_18, %c0_19, %c0_20] : memref<2x128x1xf32, #tpu.memory_space<vmem>>, vector<2x128x1xf32>
    tpu.vector_store %arg7[%c0_18, %c0_19, %c0_20], %22 {strides = array<i32>} : memref<2x128x1xf32, #tpu.memory_space<vmem>>, vector<2x128x1xf32>,
    %c0_21 = arith.constant 0 : index
    %c0_22 = arith.constant 0 : index
    %c0_23 = arith.constant 0 : index
    %24 = vector.load %arg8[%c0_21, %c0_22, %c0_23] : memref<2x128x64xf32, #tpu.memory_space<vmem>>, vector<2x128x64xf32>
    %25 = vector.broadcast %14 : vector<2x128x1xf32> to vector<2x128x64xf32>
    %26 = arith.mulf %25, %24 : vector<2x128x64xf32>
    %27 = arith.truncf %17 : vector<2x128x128xf32> to vector<2x128x128xbf16>
    "tpu.trace_start"() <{level = 10 : i32, message = "bts,bsc->btc"}> : () -> ()
    %cst_24 = arith.constant dense<0.000000e+00> : vector<2x128x64xf32>
    %28 = tpu.matmul %27, %5, %cst_24 {dimension_numbers = #tpu.dot_dimension_numbers<[2], [1], [1], [2], [0, 0, 0, 1, 1, 2], [0], [0]>} : vector<2x128x128xbf16>, vector<2x128x64xbf16>, vector<2x128x64xf32> -> vector<2x128x64xf32>
    "tpu.trace_stop"() : () -> ()
    %29 = arith.addf %26, %28 : vector<2x128x64xf32>
    %c0_25 = arith.constant 0 : index
    %c0_26 = arith.constant 0 : index
    %c0_27 = arith.constant 0 : index
    %30 = vector.load %arg8[%c0_25, %c0_26, %c0_27] : memref<2x128x64xf32, #tpu.memory_space<vmem>>, vector<2x128x64xf32>
    tpu.vector_store %arg8[%c0_25, %c0_26, %c0_27], %29 {strides = array<i32>} : memref<2x128x64xf32, #tpu.memory_space<vmem>>, vector<2x128x64xf32>,
    %c0_28 = arith.constant 0 : index
    %c0_29 = arith.constant 0 : index
    %c0_30 = arith.constant 0 : index
    %31 = vector.load %arg6[%c0_28, %c0_29, %c0_30] : memref<2x128x1xf32, #tpu.memory_space<vmem>>, vector<2x128x1xf32>
    tpu.vector_store %arg6[%c0_28, %c0_29, %c0_30], %12 {strides = array<i32>} : memref<2x128x1xf32, #tpu.memory_space<vmem>>, vector<2x128x1xf32>,
    %c0_i32_31 = arith.constant 0 : i32
    %32 = arith.cmpi eq, %arg1, %c0_i32_31 : i32
    %33 = arith.extui %32 : i1 to i32
    %c0_i32_32 = arith.constant 0 : i32
    %34 = arith.cmpi ne, %33, %c0_i32_32 : i32
    scf.if %34 {
      %c0_33 = arith.constant 0 : index
      %c0_34 = arith.constant 0 : index
      %c0_35 = arith.constant 0 : index
      %35 = vector.load %arg7[%c0_33, %c0_34, %c0_35] : memref<2x128x1xf32, #tpu.memory_space<vmem>>, vector<2x128x1xf32>
      %36 = tpu.reciprocal %35 {approx = true} : vector<2x128x1xf32> -> vector<2x128x1xf32>
      %c0_36 = arith.constant 0 : index
      %c0_37 = arith.constant 0 : index
      %c0_38 = arith.constant 0 : index
      %37 = vector.load %arg8[%c0_36, %c0_37, %c0_38] : memref<2x128x64xf32, #tpu.memory_space<vmem>>, vector<2x128x64xf32>
      %38 = vector.broadcast %36 : vector<2x128x1xf32> to vector<2x128x64xf32>
      %39 = arith.mulf %37, %38 : vector<2x128x64xf32>
      %c0_39 = arith.constant 0 : index
      %c0_40 = arith.constant 0 : index
      %c0_41 = arith.constant 0 : index
      %40 = vector.load %arg5[%c0_39, %c0_40, %c0_41] : memref<2x128x64xf32, #tpu.memory_space<vmem>>, vector<2x128x64xf32>
      tpu.vector_store %arg5[%c0_39, %c0_40, %c0_41], %39 {strides = array<i32>} : memref<2x128x64xf32, #tpu.memory_space<vmem>>, vector<2x128x64xf32>,
    } else {
    }
    return
  }
  func.func @transform_0(%arg0: i32, %arg1: i32) -> (i32, i32, i32) {
    %c0_i32 = arith.constant 0 : i32
    %c0_i32_0 = arith.constant 0 : i32
    %c0_i32_1 = arith.constant 0 : i32
    return %arg0, %c0_i32, %c0_i32_0 : i32, i32, i32
  }
  func.func @transform_1(%arg0: i32, %arg1: i32) -> (i32, i32, i32) {
    %c0_i32 = arith.constant 0 : i32
    %c0_i32_0 = arith.constant 0 : i32
    return %arg0, %c0_i32, %arg1 : i32, i32, i32
  }
  func.func @transform_2(%arg0: i32, %arg1: i32) -> (i32, i32, i32) {
    %c0_i32 = arith.constant 0 : i32
    %c0_i32_0 = arith.constant 0 : i32
    return %arg0, %arg1, %c0_i32 : i32, i32, i32
  }
  func.func @transform_3(%arg0: i32, %arg1: i32) -> (i32, i32, i32) {
    %c0_i32 = arith.constant 0 : i32
    %c0_i32_0 = arith.constant 0 : i32
    %c0_i32_1 = arith.constant 0 : i32
    return %arg0, %c0_i32, %c0_i32_0 : i32, i32, i32
  }
}

</mosaic_0001>

<llo_original>
// kernel: tpu_custom_call.1
$region0: #{tpu_custom_call.1}
  #allocation0 [shape = 'u32[]', space=smem, size = 0x4, offset = 0x4, fixed_abs, tag = 'smem constant byte address 0x4 - core index']
  #allocation1 [shape = 'u32[144,128]{1,0:T(1,128)}', space=vmem, size = 0x12000, scoped, tag = 'internal scratch']
  #allocation2 [shape = 'f32[2,128,1]{2,1,0:T(8,128)}', space=vmem, size = 0x20000, scoped, tag = 'scratch operand']
  #allocation3 [shape = 'f32[2,128,1]{2,1,0:T(8,128)}', space=vmem, size = 0x20000, scoped, tag = 'scratch operand']
  #allocation4 [shape = 'f32[2,128,64]{2,1,0:T(8,128)}', space=vmem, size = 0x20000, scoped, tag = 'scratch operand']
  %s0 = inlined_call_operand.vmem [shape: bf16[4,128,64], index: 0, kind: input, shape index: {}]
  %s1 = inlined_call_operand.vmem [shape: bf16[4,64,128], index: 1, kind: input, shape index: {}]
  %s2 = inlined_call_operand.vmem [shape: bf16[4,128,64], index: 2, kind: input, shape index: {}]
  %s3 = inlined_call_operand.vmem [shape: f32[4,128,64], index: 3, kind: output, shape index: {}]
  %s4 = sld [smem:[#allocation0]]
  $region53: #{tpu_custom_call.1} parent=0
    _
  %s6 = ssub.s32 1, %s4
  %s7 = scalar_select 0, %s6, %s4
  loop: start=0, step=1, limit=4
  $region2: #{tpu_custom_call.1} parent=0 // loop_pre_header
    _
  $region3: #{tpu_custom_call.1} parent=0 // loop_header
    %s9 = sphi 0, %s13
    %p10 = scmp.ge.s32.totalorder %s9, 4
    %s16 = sphi 0, %s28
    %s17 = sphi 0, %s24
    %s18 = sphi 0, %s16
    %s19 = sphi 0, %s17
    %s20 = sphi 0, %s18
    %s21 = sphi 0, %s19
    %s31 = sphi 0, %s33
    %s34 = sphi 0, %s31
    %s35 = sphi 0, %s34
    %s51 = sphi 0, %s35
    %s59 = sphi 0, %s61
    %s62 = sphi 0, %s59
    %s63 = sphi 0, %s62
    %s79 = sphi 0, %s63
    %s87 = sphi 0, %s89
    %s90 = sphi 0, %s87
    %s91 = sphi 0, %s90
    %s107 = sphi 0, %s91
    %s113 = sphi 0, %s115
    %s116 = sphi 0, %s113
    %s117 = sphi 0, %s116
    %s133 = sphi 0, %s117
  $region4: #{tpu_custom_call.1} parent=0 // loop_header_branch
    %12 = sbr.rel (%p10) target = $region8
  $region5: #{tpu_custom_call.1} parent=0 // loop_body
    %s14 = ssub.s32 %s9, 1
    %s15 = ssub.s32 %s9, 2
    %s22 = sadd.s32 1, %s17
    %p23 = scmp.ge.s32.totalorder %s22, 1
    %s24 = scalar_select %p23, 0, %s22
    %s25 = sadd.s32 1, %s16
    %s26 = scalar_select %p23, %s25, %s16
    %p27 = scmp.ge.s32.totalorder %s26, 2
    %s28 = scalar_select %p27, 0, %s26
    %s29 = ssub.s32 %s16, %s28
    %p30 = scmp.eq.s32.totalorder %s29, 0
    %s32 = sadd.s32 %s31, 1
    %s33 = scalar_select %p30, %s31, %s32
    %p36 = pneg %p30
    %p37 = scmp.eq.s32.totalorder %s9, 1
    %p38 = por %p36, %p37
    %p39 = scmp.ne.s32.totalorder %s31, %s34
    %p40 = scmp.eq.s32.totalorder %s9, 0
    %p41 = por %p39, %p40
    %p42 = scmp.ne.s32.totalorder %s31, %s34
    %p43 = scmp.eq.s32.totalorder %s14, 1
    %p44 = por %p42, %p43
    %p45 = scmp.ne.s32.totalorder %s34, %s35
    %p46 = scmp.eq.s32.totalorder %s14, 0
    %p47 = por %p45, %p46
    %p48 = scmp.ne.s32.totalorder %s34, %s35
    %p49 = scmp.eq.s32.totalorder %s15, 1
    %p50 = por %p48, %p49
    %p52 = scmp.ne.s32.totalorder %s35, %s51
    %p53 = scmp.eq.s32.totalorder %s15, 0
    %p54 = por %p52, %p53
    %s55 = ssub.s32 %s16, %s28
    %s56 = ssub.s32 %s17, %s24
    %s57 = sor.u32 %s55, %s56
    %p58 = scmp.eq.s32.totalorder %s57, 0
    %s60 = sadd.s32 %s59, 1
    %s61 = scalar_select %p58, %s59, %s60
    %p64 = pneg %p58
    %p65 = scmp.eq.s32.totalorder %s9, 1
    %p66 = por %p64, %p65
    %p67 = scmp.ne.s32.totalorder %s59, %s62
    %p68 = scmp.eq.s32.totalorder %s9, 0
    %p69 = por %p67, %p68
    %p70 = scmp.ne.s32.totalorder %s59, %s62
    %p71 = scmp.eq.s32.totalorder %s14, 1
    %p72 = por %p70, %p71
    %p73 = scmp.ne.s32.totalorder %s62, %s63
    %p74 = scmp.eq.s32.totalorder %s14, 0
    %p75 = por %p73, %p74
    %p76 = scmp.ne.s32.totalorder %s62, %s63
    %p77 = scmp.eq.s32.totalorder %s15, 1
    %p78 = por %p76, %p77
    %p80 = scmp.ne.s32.totalorder %s63, %s79
    %p81 = scmp.eq.s32.totalorder %s15, 0
    %p82 = por %p80, %p81
    %s83 = ssub.s32 %s16, %s28
    %s84 = ssub.s32 %s17, %s24
    %s85 = sor.u32 %s83, %s84
    %p86 = scmp.eq.s32.totalorder %s85, 0
    %s88 = sadd.s32 %s87, 1
    %s89 = scalar_select %p86, %s87, %s88
    %p92 = pneg %p86
    %p93 = scmp.eq.s32.totalorder %s9, 1
    %p94 = por %p92, %p93
    %p95 = scmp.ne.s32.totalorder %s87, %s90
    %p96 = scmp.eq.s32.totalorder %s9, 0
    %p97 = por %p95, %p96
    %p98 = scmp.ne.s32.totalorder %s87, %s90
    %p99 = scmp.eq.s32.totalorder %s14, 1
    %p100 = por %p98, %p99
    %p101 = scmp.ne.s32.totalorder %s90, %s91
    %p102 = scmp.eq.s32.totalorder %s14, 0
    %p103 = por %p101, %p102
    %p104 = scmp.ne.s32.totalorder %s90, %s91
    %p105 = scmp.eq.s32.totalorder %s15, 1
    %p106 = por %p104, %p105
    %p108 = scmp.ne.s32.totalorder %s91, %s107
    %p109 = scmp.eq.s32.totalorder %s15, 0
    %p110 = por %p108, %p109
    %s111 = ssub.s32 %s16, %s28
    %p112 = scmp.eq.s32.totalorder %s111, 0
    %s114 = sadd.s32 %s113, 1
    %s115 = scalar_select %p112, %s113, %s114
    %p118 = pneg %p112
    %p119 = scmp.eq.s32.totalorder %s9, 1
    %p120 = por %p118, %p119
    %p121 = scmp.ne.s32.totalorder %s113, %s116
    %p122 = scmp.eq.s32.totalorder %s9, 0
    %p123 = por %p121, %p122
    %p124 = scmp.ne.s32.totalorder %s113, %s116
    %p125 = scmp.eq.s32.totalorder %s14, 1
    %p126 = por %p124, %p125
    %p127 = scmp.ne.s32.totalorder %s116, %s117
    %p128 = scmp.eq.s32.totalorder %s14, 0
    %p129 = por %p127, %p128
    %p130 = scmp.ne.s32.totalorder %s116, %s117
    %p131 = scmp.eq.s32.totalorder %s15, 1
    %p132 = por %p130, %p131
    %p134 = scmp.ne.s32.totalorder %s117, %s133
    %p135 = scmp.eq.s32.totalorder %s15, 0
    %p136 = por %p134, %p135
    %p137 = scmp.le.s32.totalorder 1, %s9
    %p138 = scmp.lt.s32.totalorder %s9, 3
    %p139 = pnand %p137, %p138
    %p140 = pneg %p139
    // Predicated region
    $region9: #{tpu_custom_call.1} parent=5 // pred_check
      _
    $region10: #{tpu_custom_call.1} parent=5 // pred_check_branch
      %142 = sbr.rel (%p139) target = $region12
    $region11: #{tpu_custom_call.1} parent=5 // pred_region
      %s143 = ssub.s32 %s9, 1
    $region12: #{tpu_custom_call.1} parent=5 // pred_fallthru
      _
    %p144 = scmp.lt.s32.totalorder %s9, 2
    // Predicated region
    $region13: #{tpu_custom_call.1} parent=5 // pred_check
      %p145 = pneg %p144
    $region14: #{tpu_custom_call.1} parent=5 // pred_check_branch
      %147 = sbr.rel (%p145) target = $region16
    $region15: #{tpu_custom_call.1} parent=5 // pred_region
      // Predicated region
      $region17: #{tpu_custom_call.1} parent=15 // pred_check
        %p148 = pneg %p41
      $region18: #{tpu_custom_call.1} parent=15 // pred_check_branch
        %150 = sbr.rel (%p148) target = $region20
      $region19: #{tpu_custom_call.1} parent=15 // pred_region
        %s151 = smul.u32 2, %s16
        %p152 = scmp.lt.s32.totalorder %s151, 3
        %s153 = scalar_select %p152, %s151, 3
        %s154 = smul.addr %s153, 16
        %s155 = smul.addr %s154, 4
        %s156 = scalar_lea.vmem %s0, %s155
        %s157 = smul.u32 2, %s16
      $region20: #{tpu_custom_call.1} parent=15 // pred_fallthru
        _
      // Predicated region
      $region21: #{tpu_custom_call.1} parent=15 // pred_check
        %p158 = pneg %p69
      $region22: #{tpu_custom_call.1} parent=15 // pred_check_branch
        %160 = sbr.rel (%p158) target = $region24
      $region23: #{tpu_custom_call.1} parent=15 // pred_region
        %s161 = smul.u32 2, %s16
        %p162 = scmp.lt.s32.totalorder %s161, 3
        %s163 = scalar_select %p162, %s161, 3
        %p164 = scmp.lt.s32.totalorder %s17, 0
        %s165 = scalar_select %p164, %s17, 0
        %s166 = smul.addr %s163, 8
        %s167 = sadd.s32 %s165, %s166
        %s168 = smul.addr %s167, 4
        %s169 = scalar_lea.vmem %s1, %s168
        %s170 = smul.u32 2, %s16
      $region24: #{tpu_custom_call.1} parent=15 // pred_fallthru
        _
      // Predicated region
      $region25: #{tpu_custom_call.1} parent=15 // pred_check
        %p171 = pneg %p97
      $region26: #{tpu_custom_call.1} parent=15 // pred_check_branch
        %173 = sbr.rel (%p171) target = $region28
      $region27: #{tpu_custom_call.1} parent=15 // pred_region
        %s174 = smul.u32 2, %s16
        %s175 = smul.u32 16, %s17
        %p176 = scmp.lt.s32.totalorder %s174, 3
        %s177 = scalar_select %p176, %s174, 3
        %p178 = scmp.lt.s32.totalorder %s175, 15
        %s179 = scalar_select %p178, %s175, 15
        %s180 = smul.addr %s177, 16
        %s181 = sadd.s32 %s179, %s180
        %s182 = smul.addr %s181, 4
        %s183 = scalar_lea.vmem %s2, %s182
        %s184 = smul.u32 2, %s16
        %s185 = smul.u32 16, %s17
      $region28: #{tpu_custom_call.1} parent=15 // pred_fallthru
        _
    $region16: #{tpu_custom_call.1} parent=5 // pred_fallthru
      _
    %p186 = scmp.le.s32.totalorder 1, %s9
    %p187 = scmp.lt.s32.totalorder %s9, 3
    %p188 = pnand %p186, %p187
    %p189 = pneg %p188
    // Predicated region
    $region29: #{tpu_custom_call.1} parent=5 // pred_check
      _
    $region30: #{tpu_custom_call.1} parent=5 // pred_check_branch
      %191 = sbr.rel (%p188) target = $region32
    $region31: #{tpu_custom_call.1} parent=5 // pred_region
      %s192 = ssub.s32 %s9, 1
      %s193 = smul.u32 2, %s18
      %p194 = scmp.lt.s32.totalorder %s193, 3
      %s195 = scalar_select %p194, %s193, 3
      %s196 = smul.addr %s195, 16
      %s197 = smul.addr %s196, 4
      %s198 = scalar_lea.vmem %s0, %s197
      %p199 = pneg %p47
      %p200 = pneg %p44
      %s201 = smul.u32 2, %s18
      %p202 = scmp.lt.s32.totalorder %s201, 3
      %s203 = scalar_select %p202, %s201, 3
      %p204 = scmp.lt.s32.totalorder %s19, 0
      %s205 = scalar_select %p204, %s19, 0
      %s206 = smul.addr %s203, 8
      %s207 = sadd.s32 %s205, %s206
      %s208 = smul.addr %s207, 4
      %s209 = scalar_lea.vmem %s1, %s208
      %p210 = pneg %p75
      %p211 = pneg %p72
      %s212 = smul.u32 2, %s18
      %s213 = smul.u32 16, %s19
      %p214 = scmp.lt.s32.totalorder %s212, 3
      %s215 = scalar_select %p214, %s212, 3
      %p216 = scmp.lt.s32.totalorder %s213, 15
      %s217 = scalar_select %p216, %s213, 15
      %s218 = smul.addr %s215, 16
      %s219 = sadd.s32 %s217, %s218
      %s220 = smul.addr %s219, 4
      %s221 = scalar_lea.vmem %s2, %s220
      %p222 = pneg %p103
      %p223 = pneg %p100
      %p224 = pneg %p129
      %p225 = pneg %p126
      %s226 = smul.u32 2, %s18
      %p227 = scmp.lt.s32.totalorder %s226, 3
      %s228 = scalar_select %p227, %s226, 3
      %s229 = smul.addr %s228, 16
      %s230 = smul.addr %s229, 8
      %s231 = scalar_lea.vmem %s3, %s230
      %s232 = smul.u32 2, %s18
      %p233 = scmp.lt.s32.totalorder %s232, 3
      %s234 = scalar_select %p233, %s232, 3
      %s235 = smul.addr %s234, 16
      %s236 = smul.addr %s235, 4
      %s237 = scalar_lea.vmem %s0, %s236
      %s238 = smul.u32 2, %s18
      %s239 = smul.u32 2, %s18
      %p240 = scmp.lt.s32.totalorder %s239, 3
      %s241 = scalar_select %p240, %s239, 3
      %p242 = scmp.lt.s32.totalorder %s19, 0
      %s243 = scalar_select %p242, %s19, 0
      %s244 = smul.addr %s241, 8
      %s245 = sadd.s32 %s243, %s244
      %s246 = smul.addr %s245, 4
      %s247 = scalar_lea.vmem %s1, %s246
      %s248 = smul.u32 2, %s18
      %s249 = smul.u32 2, %s18
      %s250 = smul.u32 16, %s19
      %p251 = scmp.lt.s32.totalorder %s249, 3
      %s252 = scalar_select %p251, %s249, 3
      %p253 = scmp.lt.s32.totalorder %s250, 15
      %s254 = scalar_select %p253, %s250, 15
      %s255 = smul.addr %s252, 16
      %s256 = sadd.s32 %s254, %s255
      %s257 = smul.addr %s256, 4
      %s258 = scalar_lea.vmem %s2, %s257
      %s259 = smul.u32 2, %s18
      %s260 = smul.u32 16, %s19
      %s261 = smul.u32 2, %s18
      %p262 = scmp.lt.s32.totalorder %s261, 3
      %s263 = scalar_select %p262, %s261, 3
      %s264 = smul.addr %s263, 16
      %s265 = smul.addr %s264, 8
      %s266 = scalar_lea.vmem %s3, %s265
      %s267 = smul.u32 2, %s18
      %p269 = scmp.eq.s32.totalorder %s19, 0
      // Predicated region
      $region33: #{tpu_custom_call.1} parent=31 // pred_check
        %p270 = pneg %p269
      $region34: #{tpu_custom_call.1} parent=31 // pred_check_branch
        %272 = sbr.rel (%p270) target = $region36
      $region35: #{tpu_custom_call.1} parent=31 // pred_region
        %vm273 = vcmask 7168
        %274 = vst.msk [vmem:[#allocation2] sm:$0xff] %vm273, -1e+30
        %275 = vst.msk [vmem:[#allocation2 + $0x8] sm:$0xff] %vm273, -1e+30
        %276 = vst.msk [vmem:[#allocation2 + $0x10] sm:$0xff] %vm273, -1e+30
        %277 = vst.msk [vmem:[#allocation2 + $0x18] sm:$0xff] %vm273, -1e+30
        %278 = vst.msk [vmem:[#allocation2 + $0x20] sm:$0xff] %vm273, -1e+30
        %279 = vst.msk [vmem:[#allocation2 + $0x28] sm:$0xff] %vm273, -1e+30
        %280 = vst.msk [vmem:[#allocation2 + $0x30] sm:$0xff] %vm273, -1e+30
        %281 = vst.msk [vmem:[#allocation2 + $0x38] sm:$0xff] %vm273, -1e+30
        %282 = vst.msk [vmem:[#allocation2 + $0x40] sm:$0xff] %vm273, -1e+30
        %283 = vst.msk [vmem:[#allocation2 + $0x48] sm:$0xff] %vm273, -1e+30
        %284 = vst.msk [vmem:[#allocation2 + $0x50] sm:$0xff] %vm273, -1e+30
        %285 = vst.msk [vmem:[#allocation2 + $0x58] sm:$0xff] %vm273, -1e+30
        %286 = vst.msk [vmem:[#allocation2 + $0x60] sm:$0xff] %vm273, -1e+30
        %287 = vst.msk [vmem:[#allocation2 + $0x68] sm:$0xff] %vm273, -1e+30
        %288 = vst.msk [vmem:[#allocation2 + $0x70] sm:$0xff] %vm273, -1e+30
        %289 = vst.msk [vmem:[#allocation2 + $0x78] sm:$0xff] %vm273, -1e+30
        %290 = vst.msk [vmem:[#allocation2 + $0x80] sm:$0xff] %vm273, -1e+30
        %291 = vst.msk [vmem:[#allocation2 + $0x88] sm:$0xff] %vm273, -1e+30
        %292 = vst.msk [vmem:[#allocation2 + $0x90] sm:$0xff] %vm273, -1e+30
        %293 = vst.msk [vmem:[#allocation2 + $0x98] sm:$0xff] %vm273, -1e+30
        %294 = vst.msk [vmem:[#allocation2 + $0xa0] sm:$0xff] %vm273, -1e+30
        %295 = vst.msk [vmem:[#allocation2 + $0xa8] sm:$0xff] %vm273, -1e+30
        %296 = vst.msk [vmem:[#allocation2 + $0xb0] sm:$0xff] %vm273, -1e+30
        %297 = vst.msk [vmem:[#allocation2 + $0xb8] sm:$0xff] %vm273, -1e+30
        %298 = vst.msk [vmem:[#allocation2 + $0xc0] sm:$0xff] %vm273, -1e+30
        %299 = vst.msk [vmem:[#allocation2 + $0xc8] sm:$0xff] %vm273, -1e+30
        %300 = vst.msk [vmem:[#allocation2 + $0xd0] sm:$0xff] %vm273, -1e+30
        %301 = vst.msk [vmem:[#allocation2 + $0xd8] sm:$0xff] %vm273, -1e+30
        %302 = vst.msk [vmem:[#allocation2 + $0xe0] sm:$0xff] %vm273, -1e+30
        %303 = vst.msk [vmem:[#allocation2 + $0xe8] sm:$0xff] %vm273, -1e+30
        %304 = vst.msk [vmem:[#allocation2 + $0xf0] sm:$0xff] %vm273, -1e+30
        %305 = vst.msk [vmem:[#allocation2 + $0xf8] sm:$0xff] %vm273, -1e+30
        %306 = vst.msk [vmem:[#allocation3] sm:$0xff] %vm273, 0.0
        %307 = vst.msk [vmem:[#allocation3 + $0x8] sm:$0xff] %vm273, 0.0
        %308 = vst.msk [vmem:[#allocation3 + $0x10] sm:$0xff] %vm273, 0.0
        %309 = vst.msk [vmem:[#allocation3 + $0x18] sm:$0xff] %vm273, 0.0
        %310 = vst.msk [vmem:[#allocation3 + $0x20] sm:$0xff] %vm273, 0.0
        %311 = vst.msk [vmem:[#allocation3 + $0x28] sm:$0xff] %vm273, 0.0
        %312 = vst.msk [vmem:[#allocation3 + $0x30] sm:$0xff] %vm273, 0.0
        %313 = vst.msk [vmem:[#allocation3 + $0x38] sm:$0xff] %vm273, 0.0
        %314 = vst.msk [vmem:[#allocation3 + $0x40] sm:$0xff] %vm273, 0.0
        %315 = vst.msk [vmem:[#allocation3 + $0x48] sm:$0xff] %vm273, 0.0
        %316 = vst.msk [vmem:[#allocation3 + $0x50] sm:$0xff] %vm273, 0.0
        %317 = vst.msk [vmem:[#allocation3 + $0x58] sm:$0xff] %vm273, 0.0
        %318 = vst.msk [vmem:[#allocation3 + $0x60] sm:$0xff] %vm273, 0.0
        %319 = vst.msk [vmem:[#allocation3 + $0x68] sm:$0xff] %vm273, 0.0
        %320 = vst.msk [vmem:[#allocation3 + $0x70] sm:$0xff] %vm273, 0.0
        %321 = vst.msk [vmem:[#allocation3 + $0x78] sm:$0xff] %vm273, 0.0
        %322 = vst.msk [vmem:[#allocation3 + $0x80] sm:$0xff] %vm273, 0.0
        %323 = vst.msk [vmem:[#allocation3 + $0x88] sm:$0xff] %vm273, 0.0
        %324 = vst.msk [vmem:[#allocation3 + $0x90] sm:$0xff] %vm273, 0.0
        %325 = vst.msk [vmem:[#allocation3 + $0x98] sm:$0xff] %vm273, 0.0
        %326 = vst.msk [vmem:[#allocation3 + $0xa0] sm:$0xff] %vm273, 0.0
        %327 = vst.msk [vmem:[#allocation3 + $0xa8] sm:$0xff] %vm273, 0.0
        %328 = vst.msk [vmem:[#allocation3 + $0xb0] sm:$0xff] %vm273, 0.0
        %329 = vst.msk [vmem:[#allocation3 + $0xb8] sm:$0xff] %vm273, 0.0
        %330 = vst.msk [vmem:[#allocation3 + $0xc0] sm:$0xff] %vm273, 0.0
        %331 = vst.msk [vmem:[#allocation3 + $0xc8] sm:$0xff] %vm273, 0.0
        %332 = vst.msk [vmem:[#allocation3 + $0xd0] sm:$0xff] %vm273, 0.0
        %333 = vst.msk [vmem:[#allocation3 + $0xd8] sm:$0xff] %vm273, 0.0
        %334 = vst.msk [vmem:[#allocation3 + $0xe0] sm:$0xff] %vm273, 0.0
        %335 = vst.msk [vmem:[#allocation3 + $0xe8] sm:$0xff] %vm273, 0.0
        %336 = vst.msk [vmem:[#allocation3 + $0xf0] sm:$0xff] %vm273, 0.0
        %337 = vst.msk [vmem:[#allocation3 + $0xf8] sm:$0xff] %vm273, 0.0
        %vm338 = vcmask 523264
        %339 = vst.msk [vmem:[#allocation4] sm:$0xff] %vm338, 0.0
        %340 = vst.msk [vmem:[#allocation4 + $0x8] sm:$0xff] %vm338, 0.0
        %341 = vst.msk [vmem:[#allocation4 + $0x10] sm:$0xff] %vm338, 0.0
        %342 = vst.msk [vmem:[#allocation4 + $0x18] sm:$0xff] %vm338, 0.0
        %343 = vst.msk [vmem:[#allocation4 + $0x20] sm:$0xff] %vm338, 0.0
        %344 = vst.msk [vmem:[#allocation4 + $0x28] sm:$0xff] %vm338, 0.0
        %345 = vst.msk [vmem:[#allocation4 + $0x30] sm:$0xff] %vm338, 0.0
        %346 = vst.msk [vmem:[#allocation4 + $0x38] sm:$0xff] %vm338, 0.0
        %347 = vst.msk [vmem:[#allocation4 + $0x40] sm:$0xff] %vm338, 0.0
        %348 = vst.msk [vmem:[#allocation4 + $0x48] sm:$0xff] %vm338, 0.0
        %349 = vst.msk [vmem:[#allocation4 + $0x50] sm:$0xff] %vm338, 0.0
        %350 = vst.msk [vmem:[#allocation4 + $0x58] sm:$0xff] %vm338, 0.0
        %351 = vst.msk [vmem:[#allocation4 + $0x60] sm:$0xff] %vm338, 0.0
        %352 = vst.msk [vmem:[#allocation4 + $0x68] sm:$0xff] %vm338, 0.0
        %353 = vst.msk [vmem:[#allocation4 + $0x70] sm:$0xff] %vm338, 0.0
        %354 = vst.msk [vmem:[#allocation4 + $0x78] sm:$0xff] %vm338, 0.0
        %355 = vst.msk [vmem:[#allocation4 + $0x80] sm:$0xff] %vm338, 0.0
        %356 = vst.msk [vmem:[#allocation4 + $0x88] sm:$0xff] %vm338, 0.0
        %357 = vst.msk [vmem:[#allocation4 + $0x90] sm:$0xff] %vm338, 0.0
        %358 = vst.msk [vmem:[#allocation4 + $0x98] sm:$0xff] %vm338, 0.0
        %359 = vst.msk [vmem:[#allocation4 + $0xa0] sm:$0xff] %vm338, 0.0
        %360 = vst.msk [vmem:[#allocation4 + $0xa8] sm:$0xff] %vm338, 0.0
        %361 = vst.msk [vmem:[#allocation4 + $0xb0] sm:$0xff] %vm338, 0.0
        %362 = vst.msk [vmem:[#allocation4 + $0xb8] sm:$0xff] %vm338, 0.0
        %363 = vst.msk [vmem:[#allocation4 + $0xc0] sm:$0xff] %vm338, 0.0
        %364 = vst.msk [vmem:[#allocation4 + $0xc8] sm:$0xff] %vm338, 0.0
        %365 = vst.msk [vmem:[#allocation4 + $0xd0] sm:$0xff] %vm338, 0.0
        %366 = vst.msk [vmem:[#allocation4 + $0xd8] sm:$0xff] %vm338, 0.0
        %367 = vst.msk [vmem:[#allocation4 + $0xe0] sm:$0xff] %vm338, 0.0
        %368 = vst.msk [vmem:[#allocation4 + $0xe8] sm:$0xff] %vm338, 0.0
        %369 = vst.msk [vmem:[#allocation4 + $0xf0] sm:$0xff] %vm338, 0.0
        %370 = vst.msk [vmem:[#allocation4 + $0xf8] sm:$0xff] %vm338, 0.0
      $region36: #{tpu_custom_call.1} parent=31 // pred_fallthru
        _
      %v371 = vld [vmem:[%s237] sm:$0xf]
      %v372 = vld [vmem:[%s237 + $0x4] sm:$0xf]
      %v373 = vld [vmem:[%s237 + $0x8] sm:$0xf]
      %v374 = vld [vmem:[%s237 + $0xc] sm:$0xf]
      %v375 = vld [vmem:[%s237 + $0x10] sm:$0xf]
      %v376 = vld [vmem:[%s237 + $0x14] sm:$0xf]
      %v377 = vld [vmem:[%s237 + $0x18] sm:$0xf]
      %v378 = vld [vmem:[%s237 + $0x1c] sm:$0xf]
      %v379 = vld [vmem:[%s237 + $0x20] sm:$0xf]
      %v380 = vld [vmem:[%s237 + $0x24] sm:$0xf]
      %v381 = vld [vmem:[%s237 + $0x28] sm:$0xf]
      %v382 = vld [vmem:[%s237 + $0x2c] sm:$0xf]
      %v383 = vld [vmem:[%s237 + $0x30] sm:$0xf]
      %v384 = vld [vmem:[%s237 + $0x34] sm:$0xf]
      %v385 = vld [vmem:[%s237 + $0x38] sm:$0xf]
      %v386 = vld [vmem:[%s237 + $0x3c] sm:$0xf]
      %v387 = vld [vmem:[%s237 + $0x40] sm:$0xf]
      %v388 = vld [vmem:[%s237 + $0x44] sm:$0xf]
      %v389 = vld [vmem:[%s237 + $0x48] sm:$0xf]
      %v390 = vld [vmem:[%s237 + $0x4c] sm:$0xf]
      %v391 = vld [vmem:[%s237 + $0x50] sm:$0xf]
      %v392 = vld [vmem:[%s237 + $0x54] sm:$0xf]
      %v393 = vld [vmem:[%s237 + $0x58] sm:$0xf]
      %v394 = vld [vmem:[%s237 + $0x5c] sm:$0xf]
      %v395 = vld [vmem:[%s237 + $0x60] sm:$0xf]
      %v396 = vld [vmem:[%s237 + $0x64] sm:$0xf]
      %v397 = vld [vmem:[%s237 + $0x68] sm:$0xf]
      %v398 = vld [vmem:[%s237 + $0x6c] sm:$0xf]
      %v399 = vld [vmem:[%s237 + $0x70] sm:$0xf]
      %v400 = vld [vmem:[%s237 + $0x74] sm:$0xf]
      %v401 = vld [vmem:[%s237 + $0x78] sm:$0xf]
      %v402 = vld [vmem:[%s237 + $0x7c] sm:$0xf]
      %v403 = vld [vmem:[%s247] sm:$0xf]
      %v404 = vld [vmem:[%s247 + $0x4] sm:$0xf]
      %v405 = vld [vmem:[%s247 + $0x8] sm:$0xf]
      %v406 = vld [vmem:[%s247 + $0xc] sm:$0xf]
      %v407 = vld [vmem:[%s247 + $0x10] sm:$0xf]
      %v408 = vld [vmem:[%s247 + $0x14] sm:$0xf]
      %v409 = vld [vmem:[%s247 + $0x18] sm:$0xf]
      %v410 = vld [vmem:[%s247 + $0x1c] sm:$0xf]
      %v411 = vld [vmem:[%s247 + $0x20] sm:$0xf]
      %v412 = vld [vmem:[%s247 + $0x24] sm:$0xf]
      %v413 = vld [vmem:[%s247 + $0x28] sm:$0xf]
      %v414 = vld [vmem:[%s247 + $0x2c] sm:$0xf]
      %v415 = vld [vmem:[%s247 + $0x30] sm:$0xf]
      %v416 = vld [vmem:[%s247 + $0x34] sm:$0xf]
      %v417 = vld [vmem:[%s247 + $0x38] sm:$0xf]
      %v418 = vld [vmem:[%s247 + $0x3c] sm:$0xf]
      %v419 = vld [vmem:[%s258] sm:$0xf]
      %v420 = vld [vmem:[%s258 + $0x4] sm:$0xf]
      %v421 = vld [vmem:[%s258 + $0x8] sm:$0xf]
      %v422 = vld [vmem:[%s258 + $0xc] sm:$0xf]
      %v423 = vld [vmem:[%s258 + $0x10] sm:$0xf]
      %v424 = vld [vmem:[%s258 + $0x14] sm:$0xf]
      %v425 = vld [vmem:[%s258 + $0x18] sm:$0xf]
      %v426 = vld [vmem:[%s258 + $0x1c] sm:$0xf]
      %v427 = vld [vmem:[%s258 + $0x20] sm:$0xf]
      %v428 = vld [vmem:[%s258 + $0x24] sm:$0xf]
      %v429 = vld [vmem:[%s258 + $0x28] sm:$0xf]
      %v430 = vld [vmem:[%s258 + $0x2c] sm:$0xf]
      %v431 = vld [vmem:[%s258 + $0x30] sm:$0xf]
      %v432 = vld [vmem:[%s258 + $0x34] sm:$0xf]
      %v433 = vld [vmem:[%s258 + $0x38] sm:$0xf]
      %v434 = vld [vmem:[%s258 + $0x3c] sm:$0xf]
      %v435 = vld [vmem:[%s258 + $0x40] sm:$0xf]
      %v436 = vld [vmem:[%s258 + $0x44] sm:$0xf]
      %v437 = vld [vmem:[%s258 + $0x48] sm:$0xf]
      %v438 = vld [vmem:[%s258 + $0x4c] sm:$0xf]
      %v439 = vld [vmem:[%s258 + $0x50] sm:$0xf]
      %v440 = vld [vmem:[%s258 + $0x54] sm:$0xf]
      %v441 = vld [vmem:[%s258 + $0x58] sm:$0xf]
      %v442 = vld [vmem:[%s258 + $0x5c] sm:$0xf]
      %v443 = vld [vmem:[%s258 + $0x60] sm:$0xf]
      %v444 = vld [vmem:[%s258 + $0x64] sm:$0xf]
      %v445 = vld [vmem:[%s258 + $0x68] sm:$0xf]
      %v446 = vld [vmem:[%s258 + $0x6c] sm:$0xf]
      %v447 = vld [vmem:[%s258 + $0x70] sm:$0xf]
      %v448 = vld [vmem:[%s258 + $0x74] sm:$0xf]
      %v449 = vld [vmem:[%s258 + $0x78] sm:$0xf]
      %v450 = vld [vmem:[%s258 + $0x7c] sm:$0xf]
      %v467 = vunpack.c.l.b16 %v371
      %v468 = vunpack.c.l.b16 %v372
      %v469 = vunpack.c.l.b16 %v373
      %v470 = vunpack.c.l.b16 %v374
      %v471 = vunpack.c.l.b16 %v375
      %v472 = vunpack.c.l.b16 %v376
      %v473 = vunpack.c.l.b16 %v377
      %v474 = vunpack.c.l.b16 %v378
      %v475 = vunpack.c.l.b16 %v379
      %v476 = vunpack.c.l.b16 %v380
      %v477 = vunpack.c.l.b16 %v381
      %v478 = vunpack.c.l.b16 %v382
      %v479 = vunpack.c.l.b16 %v383
      %v480 = vunpack.c.l.b16 %v384
      %v481 = vunpack.c.l.b16 %v385
      %v482 = vunpack.c.l.b16 %v386
      %v483 = vpack.c.b16 %v468, %v467
      %v484 = vpack.c.b16 %v470, %v469
      %v485 = vpack.c.b16 %v472, %v471
      %v486 = vpack.c.b16 %v474, %v473
      %v487 = vpack.c.b16 %v476, %v475
      %v488 = vpack.c.b16 %v478, %v477
      %v489 = vpack.c.b16 %v480, %v479
      %v490 = vpack.c.b16 %v482, %v481
      %v499 = vunpack.c.l.b16 %v403
      %v500 = vunpack.c.l.b16 %v404
      %v501 = vunpack.c.l.b16 %v405
      %v502 = vunpack.c.l.b16 %v406
      %v503 = vunpack.c.l.b16 %v407
      %v504 = vunpack.c.l.b16 %v408
      %v505 = vunpack.c.l.b16 %v409
      %v506 = vunpack.c.l.b16 %v410
      %v507 = vpack.c.b16 %v500, %v499
      %v508 = vpack.c.b16 %v502, %v501
      %v509 = vpack.c.b16 %v504, %v503
      %v510 = vpack.c.b16 %v506, %v505
      %vm515 = vcmask 523264
      %v517 = vsel %vm515, %v483, 0
      %v520 = vsel %vm515, %v484, 0
      %v523 = vsel %vm515, %v485, 0
      %v526 = vsel %vm515, %v486, 0
      %v529 = vsel %vm515, %v487, 0
      %v532 = vsel %vm515, %v488, 0
      %v535 = vsel %vm515, %v489, 0
      %v538 = vsel %vm515, %v490, 0
      %540 = vmatprep.subr.bf16.mxu0 0
      %541 = vmatpush1.bf16.msra.mxu0 0
      %542 = vmatprep.subr.bf16.mxu0 0
      %543 = vmatpush1.bf16.msra.mxu0 0
      %544 = vmatprep.subr.bf16.mxu0 0
      %545 = vmatpush1.bf16.msra.mxu0 0
      %546 = vmatprep.subr.bf16.mxu0 0
      %547 = vmatpush1.bf16.msra.mxu0 0
      %548 = vmatprep.subr.bf16.mxu0 0
      %549 = vmatpush1.bf16.msra.mxu0 %v510
      %550 = vmatprep.subr.bf16.mxu0 0
      %551 = vmatpush1.bf16.msra.mxu0 %v509
      %552 = vmatprep.subr.bf16.mxu0 0
      %553 = vmatpush1.bf16.msra.mxu0 %v508
      %554 = vmatprep.subr.bf16.mxu0 0
      %555 = vmatpush1.bf16.msra.mxu0 %v507
      %556 = vmatprep.subr.bf16.mxu0 0
      %557 = vmatpush2.bf16.msra.mxu0 0
      %558 = vmatprep.subr.bf16.mxu0 0
      %559 = vmatpush2.bf16.msra.mxu0 0
      %560 = vmatprep.subr.bf16.mxu0 0
      %561 = vmatpush2.bf16.msra.mxu0 0
      %562 = vmatprep.subr.bf16.mxu0 0
      %563 = vmatpush2.bf16.msra.mxu0 0
      %564 = vmatprep.subr.bf16.mxu0 0
      %565 = vmatpush2.bf16.msra.mxu0 0
      %566 = vmatprep.subr.bf16.mxu0 0
      %567 = vmatpush2.bf16.msra.mxu0 0
      %568 = vmatprep.subr.bf16.mxu0 0
      %569 = vmatpush2.bf16.msra.mxu0 0
      %570 = vmatprep.subr.bf16.mxu0 0
      %571 = vmatpush2.bf16.msra.mxu0 0
      %572 = vmatprep.mubr.bf16.mxu0 0
      %573 = vmatmul.mubr.bf16.gmra.mxu0 %v517
      %v574 = vpop.f32.mrf.mxu0
      %v575 = vadd.f32 0.0, %v574
      %v576 = vpop.f32.mrf.mxu0
      %v577 = vpop.f32.mrf.mxu0
      %v578 = vadd.f32 0.0, %v577
      %v579 = vpop.f32.mrf.mxu0
      %580 = vmatprep.mubr.bf16.mxu0 0
      %581 = vmatmul.mubr.bf16.gmra.mxu0 %v520
      %v582 = vpop.f32.mrf.mxu0
      %v583 = vadd.f32 0.0, %v582
      %v584 = vpop.f32.mrf.mxu0
      %v585 = vpop.f32.mrf.mxu0
      %v586 = vadd.f32 0.0, %v585
      %v587 = vpop.f32.mrf.mxu0
      %588 = vmatprep.mubr.bf16.mxu0 0
      %589 = vmatmul.mubr.bf16.gmra.mxu0 %v523
      %v590 = vpop.f32.mrf.mxu0
      %v591 = vadd.f32 0.0, %v590
      %v592 = vpop.f32.mrf.mxu0
      %v593 = vpop.f32.mrf.mxu0
      %v594 = vadd.f32 0.0, %v593
      %v595 = vpop.f32.mrf.mxu0
      %596 = vmatprep.mubr.bf16.mxu0 0
      %597 = vmatmul.mubr.bf16.gmra.mxu0 %v526
      %v598 = vpop.f32.mrf.mxu0
      %v599 = vadd.f32 0.0, %v598
      %v600 = vpop.f32.mrf.mxu0
      %v601 = vpop.f32.mrf.mxu0
      %v602 = vadd.f32 0.0, %v601
      %v603 = vpop.f32.mrf.mxu0
      %604 = vmatprep.mubr.bf16.mxu0 0
      %605 = vmatmul.mubr.bf16.gmra.mxu0 %v529
      %v606 = vpop.f32.mrf.mxu0
      %v607 = vadd.f32 0.0, %v606
      %v608 = vpop.f32.mrf.mxu0
      %v609 = vpop.f32.mrf.mxu0
      %v610 = vadd.f32 0.0, %v609
      %v611 = vpop.f32.mrf.mxu0
      %612 = vmatprep.mubr.bf16.mxu0 0
      %613 = vmatmul.mubr.bf16.gmra.mxu0 %v532
      %v614 = vpop.f32.mrf.mxu0
      %v615 = vadd.f32 0.0, %v614
      %v616 = vpop.f32.mrf.mxu0
      %v617 = vpop.f32.mrf.mxu0
      %v618 = vadd.f32 0.0, %v617
      %v619 = vpop.f32.mrf.mxu0
      %620 = vmatprep.mubr.bf16.mxu0 0
      %621 = vmatmul.mubr.bf16.gmra.mxu0 %v535
      %v622 = vpop.f32.mrf.mxu0
      %v623 = vadd.f32 0.0, %v622
      %v624 = vpop.f32.mrf.mxu0
      %v625 = vpop.f32.mrf.mxu0
      %v626 = vadd.f32 0.0, %v625
      %v627 = vpop.f32.mrf.mxu0
      %628 = vmatprep.mubr.bf16.mxu0 0
      %629 = vmatmul.mubr.bf16.gmra.mxu0 %v538
      %v630 = vpop.f32.mrf.mxu0
      %v631 = vadd.f32 0.0, %v630
      %v632 = vpop.f32.mrf.mxu0
      %v633 = vpop.f32.mrf.mxu0
      %v634 = vadd.f32 0.0, %v633
      %v635 = vpop.f32.mrf.mxu0
      %636 = vdwg.mxu0
      %v653 = vunpack.c.l.b16 %v387
      %v654 = vunpack.c.l.b16 %v388
      %v655 = vunpack.c.l.b16 %v389
      %v656 = vunpack.c.l.b16 %v390
      %v657 = vunpack.c.l.b16 %v391
      %v658 = vunpack.c.l.b16 %v392
      %v659 = vunpack.c.l.b16 %v393
      %v660 = vunpack.c.l.b16 %v394
      %v661 = vunpack.c.l.b16 %v395
      %v662 = vunpack.c.l.b16 %v396
      %v663 = vunpack.c.l.b16 %v397
      %v664 = vunpack.c.l.b16 %v398
      %v665 = vunpack.c.l.b16 %v399
      %v666 = vunpack.c.l.b16 %v400
      %v667 = vunpack.c.l.b16 %v401
      %v668 = vunpack.c.l.b16 %v402
      %v669 = vpack.c.b16 %v654, %v653
      %v670 = vpack.c.b16 %v656, %v655
      %v671 = vpack.c.b16 %v658, %v657
      %v672 = vpack.c.b16 %v660, %v659
      %v673 = vpack.c.b16 %v662, %v661
      %v674 = vpack.c.b16 %v664, %v663
      %v675 = vpack.c.b16 %v666, %v665
      %v676 = vpack.c.b16 %v668, %v667
      %v685 = vunpack.c.l.b16 %v411
      %v686 = vunpack.c.l.b16 %v412
      %v687 = vunpack.c.l.b16 %v413
      %v688 = vunpack.c.l.b16 %v414
      %v689 = vunpack.c.l.b16 %v415
      %v690 = vunpack.c.l.b16 %v416
      %v691 = vunpack.c.l.b16 %v417
      %v692 = vunpack.c.l.b16 %v418
      %v693 = vpack.c.b16 %v686, %v685
      %v694 = vpack.c.b16 %v688, %v687
      %v695 = vpack.c.b16 %v690, %v689
      %v696 = vpack.c.b16 %v692, %v691
      %v702 = vsel %vm515, %v669, 0
      %v705 = vsel %vm515, %v670, 0
      %v708 = vsel %vm515, %v671, 0
      %v711 = vsel %vm515, %v672, 0
      %v714 = vsel %vm515, %v673, 0
      %v717 = vsel %vm515, %v674, 0
      %v720 = vsel %vm515, %v675, 0
      %v723 = vsel %vm515, %v676, 0
      %725 = vmatprep.subr.bf16.mxu0 0
      %726 = vmatpush1.bf16.msra.mxu0 0
      %727 = vmatprep.subr.bf16.mxu0 0
      %728 = vmatpush1.bf16.msra.mxu0 0
      %729 = vmatprep.subr.bf16.mxu0 0
      %730 = vmatpush1.bf16.msra.mxu0 0
      %731 = vmatprep.subr.bf16.mxu0 0
      %732 = vmatpush1.bf16.msra.mxu0 0
      %733 = vmatprep.subr.bf16.mxu0 0
      %734 = vmatpush1.bf16.msra.mxu0 %v696
      %735 = vmatprep.subr.bf16.mxu0 0
      %736 = vmatpush1.bf16.msra.mxu0 %v695
      %737 = vmatprep.subr.bf16.mxu0 0
      %738 = vmatpush1.bf16.msra.mxu0 %v694
      %739 = vmatprep.subr.bf16.mxu0 0
      %740 = vmatpush1.bf16.msra.mxu0 %v693
      %741 = vmatprep.subr.bf16.mxu0 0
      %742 = vmatpush2.bf16.msra.mxu0 0
      %743 = vmatprep.subr.bf16.mxu0 0
      %744 = vmatpush2.bf16.msra.mxu0 0
      %745 = vmatprep.subr.bf16.mxu0 0
      %746 = vmatpush2.bf16.msra.mxu0 0
      %747 = vmatprep.subr.bf16.mxu0 0
      %748 = vmatpush2.bf16.msra.mxu0 0
      %749 = vmatprep.subr.bf16.mxu0 0
      %750 = vmatpush2.bf16.msra.mxu0 0
      %751 = vmatprep.subr.bf16.mxu0 0
      %752 = vmatpush2.bf16.msra.mxu0 0
      %753 = vmatprep.subr.bf16.mxu0 0
      %754 = vmatpush2.bf16.msra.mxu0 0
      %755 = vmatprep.subr.bf16.mxu0 0
      %756 = vmatpush2.bf16.msra.mxu0 0
      %757 = vmatprep.mubr.bf16.mxu0 0
      %758 = vmatmul.mubr.bf16.gmra.mxu0 %v702
      %v759 = vpop.f32.mrf.mxu0
      %v760 = vadd.f32 0.0, %v759
      %v761 = vpop.f32.mrf.mxu0
      %v762 = vpop.f32.mrf.mxu0
      %v763 = vadd.f32 0.0, %v762
      %v764 = vpop.f32.mrf.mxu0
      %765 = vmatprep.mubr.bf16.mxu0 0
      %766 = vmatmul.mubr.bf16.gmra.mxu0 %v705
      %v767 = vpop.f32.mrf.mxu0
      %v768 = vadd.f32 0.0, %v767
      %v769 = vpop.f32.mrf.mxu0
      %v770 = vpop.f32.mrf.mxu0
      %v771 = vadd.f32 0.0, %v770
      %v772 = vpop.f32.mrf.mxu0
      %773 = vmatprep.mubr.bf16.mxu0 0
      %774 = vmatmul.mubr.bf16.gmra.mxu0 %v708
      %v775 = vpop.f32.mrf.mxu0
      %v776 = vadd.f32 0.0, %v775
      %v777 = vpop.f32.mrf.mxu0
      %v778 = vpop.f32.mrf.mxu0
      %v779 = vadd.f32 0.0, %v778
      %v780 = vpop.f32.mrf.mxu0
      %781 = vmatprep.mubr.bf16.mxu0 0
      %782 = vmatmul.mubr.bf16.gmra.mxu0 %v711
      %v783 = vpop.f32.mrf.mxu0
      %v784 = vadd.f32 0.0, %v783
      %v785 = vpop.f32.mrf.mxu0
      %v786 = vpop.f32.mrf.mxu0
      %v787 = vadd.f32 0.0, %v786
      %v788 = vpop.f32.mrf.mxu0
      %789 = vmatprep.mubr.bf16.mxu0 0
      %790 = vmatmul.mubr.bf16.gmra.mxu0 %v714
      %v791 = vpop.f32.mrf.mxu0
      %v792 = vadd.f32 0.0, %v791
      %v793 = vpop.f32.mrf.mxu0
      %v794 = vpop.f32.mrf.mxu0
      %v795 = vadd.f32 0.0, %v794
      %v796 = vpop.f32.mrf.mxu0
      %797 = vmatprep.mubr.bf16.mxu0 0
      %798 = vmatmul.mubr.bf16.gmra.mxu0 %v717
      %v799 = vpop.f32.mrf.mxu0
      %v800 = vadd.f32 0.0, %v799
      %v801 = vpop.f32.mrf.mxu0
      %v802 = vpop.f32.mrf.mxu0
      %v803 = vadd.f32 0.0, %v802
      %v804 = vpop.f32.mrf.mxu0
      %805 = vmatprep.mubr.bf16.mxu0 0
      %806 = vmatmul.mubr.bf16.gmra.mxu0 %v720
      %v807 = vpop.f32.mrf.mxu0
      %v808 = vadd.f32 0.0, %v807
      %v809 = vpop.f32.mrf.mxu0
      %v810 = vpop.f32.mrf.mxu0
      %v811 = vadd.f32 0.0, %v810
      %v812 = vpop.f32.mrf.mxu0
      %813 = vmatprep.mubr.bf16.mxu0 0
      %814 = vmatmul.mubr.bf16.gmra.mxu0 %v723
      %v815 = vpop.f32.mrf.mxu0
      %v816 = vadd.f32 0.0, %v815
      %v817 = vpop.f32.mrf.mxu0
      %v818 = vpop.f32.mrf.mxu0
      %v819 = vadd.f32 0.0, %v818
      %v820 = vpop.f32.mrf.mxu0
      %821 = vdwg.mxu0
      %v822 = vmul.f32 %v575, 0.125
      %v823 = vmul.f32 %v578, 0.125
      %v824 = vmul.f32 %v583, 0.125
      %v825 = vmul.f32 %v586, 0.125
      %v826 = vmul.f32 %v591, 0.125
      %v827 = vmul.f32 %v594, 0.125
      %v828 = vmul.f32 %v599, 0.125
      %v829 = vmul.f32 %v602, 0.125
      %v830 = vmul.f32 %v607, 0.125
      %v831 = vmul.f32 %v610, 0.125
      %v832 = vmul.f32 %v615, 0.125
      %v833 = vmul.f32 %v618, 0.125
      %v834 = vmul.f32 %v623, 0.125
      %v835 = vmul.f32 %v626, 0.125
      %v836 = vmul.f32 %v631, 0.125
      %v837 = vmul.f32 %v634, 0.125
      %v838 = vmul.f32 %v760, 0.125
      %v839 = vmul.f32 %v763, 0.125
      %v840 = vmul.f32 %v768, 0.125
      %v841 = vmul.f32 %v771, 0.125
      %v842 = vmul.f32 %v776, 0.125
      %v843 = vmul.f32 %v779, 0.125
      %v844 = vmul.f32 %v784, 0.125
      %v845 = vmul.f32 %v787, 0.125
      %v846 = vmul.f32 %v792, 0.125
      %v847 = vmul.f32 %v795, 0.125
      %v848 = vmul.f32 %v800, 0.125
      %v849 = vmul.f32 %v803, 0.125
      %v850 = vmul.f32 %v808, 0.125
      %v851 = vmul.f32 %v811, 0.125
      %v852 = vmul.f32 %v816, 0.125
      %v853 = vmul.f32 %v819, 0.125
      %v854 = vld [vmem:[#allocation2] sm:$0xff]
      %v855 = vld [vmem:[#allocation2 + $0x8] sm:$0xff]
      %v856 = vld [vmem:[#allocation2 + $0x10] sm:$0xff]
      %v857 = vld [vmem:[#allocation2 + $0x18] sm:$0xff]
      %v858 = vld [vmem:[#allocation2 + $0x20] sm:$0xff]
      %v859 = vld [vmem:[#allocation2 + $0x28] sm:$0xff]
      %v860 = vld [vmem:[#allocation2 + $0x30] sm:$0xff]
      %v861 = vld [vmem:[#allocation2 + $0x38] sm:$0xff]
      %v862 = vld [vmem:[#allocation2 + $0x40] sm:$0xff]
      %v863 = vld [vmem:[#allocation2 + $0x48] sm:$0xff]
      %v864 = vld [vmem:[#allocation2 + $0x50] sm:$0xff]
      %v865 = vld [vmem:[#allocation2 + $0x58] sm:$0xff]
      %v866 = vld [vmem:[#allocation2 + $0x60] sm:$0xff]
      %v867 = vld [vmem:[#allocation2 + $0x68] sm:$0xff]
      %v868 = vld [vmem:[#allocation2 + $0x70] sm:$0xff]
      %v869 = vld [vmem:[#allocation2 + $0x78] sm:$0xff]
      %v870 = vld [vmem:[#allocation2 + $0x80] sm:$0xff]
      %v871 = vld [vmem:[#allocation2 + $0x88] sm:$0xff]
      %v872 = vld [vmem:[#allocation2 + $0x90] sm:$0xff]
      %v873 = vld [vmem:[#allocation2 + $0x98] sm:$0xff]
      %v874 = vld [vmem:[#allocation2 + $0xa0] sm:$0xff]
      %v875 = vld [vmem:[#allocation2 + $0xa8] sm:$0xff]
      %v876 = vld [vmem:[#allocation2 + $0xb0] sm:$0xff]
      %v877 = vld [vmem:[#allocation2 + $0xb8] sm:$0xff]
      %v878 = vld [vmem:[#allocation2 + $0xc0] sm:$0xff]
      %v879 = vld [vmem:[#allocation2 + $0xc8] sm:$0xff]
      %v880 = vld [vmem:[#allocation2 + $0xd0] sm:$0xff]
      %v881 = vld [vmem:[#allocation2 + $0xd8] sm:$0xff]
      %v882 = vld [vmem:[#allocation2 + $0xe0] sm:$0xff]
      %v883 = vld [vmem:[#allocation2 + $0xe8] sm:$0xff]
      %v884 = vld [vmem:[#allocation2 + $0xf0] sm:$0xff]
      %v885 = vld [vmem:[#allocation2 + $0xf8] sm:$0xff]
      %886 = vmax.xlane.f32.xlu0 %v822
      %v887 = vpop.xlane.xlu0 %886
      %888 = vmax.xlane.f32.xlu0 %v823
      %v889 = vpop.xlane.xlu0 %888
      %890 = vmax.xlane.f32.xlu0 %v824
      %v891 = vpop.xlane.xlu0 %890
      %892 = vmax.xlane.f32.xlu0 %v825
      %v893 = vpop.xlane.xlu0 %892
      %894 = vmax.xlane.f32.xlu0 %v826
      %v895 = vpop.xlane.xlu0 %894
      %896 = vmax.xlane.f32.xlu0 %v827
      %v897 = vpop.xlane.xlu0 %896
      %898 = vmax.xlane.f32.xlu0 %v828
      %v899 = vpop.xlane.xlu0 %898
      %900 = vmax.xlane.f32.xlu0 %v829
      %v901 = vpop.xlane.xlu0 %900
      %902 = vmax.xlane.f32.xlu0 %v830
      %v903 = vpop.xlane.xlu0 %902
      %904 = vmax.xlane.f32.xlu0 %v831
      %v905 = vpop.xlane.xlu0 %904
      %906 = vmax.xlane.f32.xlu0 %v832
      %v907 = vpop.xlane.xlu0 %906
      %908 = vmax.xlane.f32.xlu0 %v833
      %v909 = vpop.xlane.xlu0 %908
      %910 = vmax.xlane.f32.xlu0 %v834
      %v911 = vpop.xlane.xlu0 %910
      %912 = vmax.xlane.f32.xlu0 %v835
      %v913 = vpop.xlane.xlu0 %912
      %914 = vmax.xlane.f32.xlu0 %v836
      %v915 = vpop.xlane.xlu0 %914
      %916 = vmax.xlane.f32.xlu0 %v837
      %v917 = vpop.xlane.xlu0 %916
      %918 = vmax.xlane.f32.xlu0 %v838
      %v919 = vpop.xlane.xlu0 %918
      %920 = vmax.xlane.f32.xlu0 %v839
      %v921 = vpop.xlane.xlu0 %920
      %922 = vmax.xlane.f32.xlu0 %v840
      %v923 = vpop.xlane.xlu0 %922
      %924 = vmax.xlane.f32.xlu0 %v841
      %v925 = vpop.xlane.xlu0 %924
      %926 = vmax.xlane.f32.xlu0 %v842
      %v927 = vpop.xlane.xlu0 %926
      %928 = vmax.xlane.f32.xlu0 %v843
      %v929 = vpop.xlane.xlu0 %928
      %930 = vmax.xlane.f32.xlu0 %v844
      %v931 = vpop.xlane.xlu0 %930
      %932 = vmax.xlane.f32.xlu0 %v845
      %v933 = vpop.xlane.xlu0 %932
      %934 = vmax.xlane.f32.xlu0 %v846
      %v935 = vpop.xlane.xlu0 %934
      %936 = vmax.xlane.f32.xlu0 %v847
      %v937 = vpop.xlane.xlu0 %936
      %938 = vmax.xlane.f32.xlu0 %v848
      %v939 = vpop.xlane.xlu0 %938
      %940 = vmax.xlane.f32.xlu0 %v849
      %v941 = vpop.xlane.xlu0 %940
      %942 = vmax.xlane.f32.xlu0 %v850
      %v943 = vpop.xlane.xlu0 %942
      %944 = vmax.xlane.f32.xlu0 %v851
      %v945 = vpop.xlane.xlu0 %944
      %946 = vmax.xlane.f32.xlu0 %v852
      %v947 = vpop.xlane.xlu0 %946
      %948 = vmax.xlane.f32.xlu0 %v853
      %v949 = vpop.xlane.xlu0 %948
      %v950 = vmax.f32 %v854, %v887
      %v951 = vmax.f32 %v855, %v889
      %v952 = vmax.f32 %v856, %v891
      %v953 = vmax.f32 %v857, %v893
      %v954 = vmax.f32 %v858, %v895
      %v955 = vmax.f32 %v859, %v897
      %v956 = vmax.f32 %v860, %v899
      %v957 = vmax.f32 %v861, %v901
      %v958 = vmax.f32 %v862, %v903
      %v959 = vmax.f32 %v863, %v905
      %v960 = vmax.f32 %v864, %v907
      %v961 = vmax.f32 %v865, %v909
      %v962 = vmax.f32 %v866, %v911
      %v963 = vmax.f32 %v867, %v913
      %v964 = vmax.f32 %v868, %v915
      %v965 = vmax.f32 %v869, %v917
      %v966 = vmax.f32 %v870, %v919
      %v967 = vmax.f32 %v871, %v921
      %v968 = vmax.f32 %v872, %v923
      %v969 = vmax.f32 %v873, %v925
      %v970 = vmax.f32 %v874, %v927
      %v971 = vmax.f32 %v875, %v929
      %v972 = vmax.f32 %v876, %v931
      %v973 = vmax.f32 %v877, %v933
      %v974 = vmax.f32 %v878, %v935
      %v975 = vmax.f32 %v879, %v937
      %v976 = vmax.f32 %v880, %v939
      %v977 = vmax.f32 %v881, %v941
      %v978 = vmax.f32 %v882, %v943
      %v979 = vmax.f32 %v883, %v945
      %v980 = vmax.f32 %v884, %v947
      %v981 = vmax.f32 %v885, %v949
      %v982 = vsub.f32 %v854, %v950
      %v983 = vsub.f32 %v855, %v951
      %v984 = vsub.f32 %v856, %v952
      %v985 = vsub.f32 %v857, %v953
      %v986 = vsub.f32 %v858, %v954
      %v987 = vsub.f32 %v859, %v955
      %v988 = vsub.f32 %v860, %v956
      %v989 = vsub.f32 %v861, %v957
      %v990 = vsub.f32 %v862, %v958
      %v991 = vsub.f32 %v863, %v959
      %v992 = vsub.f32 %v864, %v960
      %v993 = vsub.f32 %v865, %v961
      %v994 = vsub.f32 %v866, %v962
      %v995 = vsub.f32 %v867, %v963
      %v996 = vsub.f32 %v868, %v964
      %v997 = vsub.f32 %v869, %v965
      %v998 = vsub.f32 %v870, %v966
      %v999 = vsub.f32 %v871, %v967
      %v1000 = vsub.f32 %v872, %v968
      %v1001 = vsub.f32 %v873, %v969
      %v1002 = vsub.f32 %v874, %v970
      %v1003 = vsub.f32 %v875, %v971
      %v1004 = vsub.f32 %v876, %v972
      %v1005 = vsub.f32 %v877, %v973
      %v1006 = vsub.f32 %v878, %v974
      %v1007 = vsub.f32 %v879, %v975
      %v1008 = vsub.f32 %v880, %v976
      %v1009 = vsub.f32 %v881, %v977
      %v1010 = vsub.f32 %v882, %v978
      %v1011 = vsub.f32 %v883, %v979
      %v1012 = vsub.f32 %v884, %v980
      %v1013 = vsub.f32 %v885, %v981
      %v1014 = vmul.f32 %v982, 1.442695
      %v1015 = vpow.pop %v1014
      %v1016 = vmul.f32 %v983, 1.442695
      %v1017 = vpow.pop %v1016
      %v1018 = vmul.f32 %v984, 1.442695
      %v1019 = vpow.pop %v1018
      %v1020 = vmul.f32 %v985, 1.442695
      %v1021 = vpow.pop %v1020
      %v1022 = vmul.f32 %v986, 1.442695
      %v1023 = vpow.pop %v1022
      %v1024 = vmul.f32 %v987, 1.442695
      %v1025 = vpow.pop %v1024
      %v1026 = vmul.f32 %v988, 1.442695
      %v1027 = vpow.pop %v1026
      %v1028 = vmul.f32 %v989, 1.442695
      %v1029 = vpow.pop %v1028
      %v1030 = vmul.f32 %v990, 1.442695
      %v1031 = vpow.pop %v1030
      %v1032 = vmul.f32 %v991, 1.442695
      %v1033 = vpow.pop %v1032
      %v1034 = vmul.f32 %v992, 1.442695
      %v1035 = vpow.pop %v1034
      %v1036 = vmul.f32 %v993, 1.442695
      %v1037 = vpow.pop %v1036
      %v1038 = vmul.f32 %v994, 1.442695
      %v1039 = vpow.pop %v1038
      %v1040 = vmul.f32 %v995, 1.442695
      %v1041 = vpow.pop %v1040
      %v1042 = vmul.f32 %v996, 1.442695
      %v1043 = vpow.pop %v1042
      %v1044 = vmul.f32 %v997, 1.442695
      %v1045 = vpow.pop %v1044
      %v1046 = vmul.f32 %v998, 1.442695
      %v1047 = vpow.pop %v1046
      %v1048 = vmul.f32 %v999, 1.442695
      %v1049 = vpow.pop %v1048
      %v1050 = vmul.f32 %v1000, 1.442695
      %v1051 = vpow.pop %v1050
      %v1052 = vmul.f32 %v1001, 1.442695
      %v1053 = vpow.pop %v1052
      %v1054 = vmul.f32 %v1002, 1.442695
      %v1055 = vpow.pop %v1054
      %v1056 = vmul.f32 %v1003, 1.442695
      %v1057 = vpow.pop %v1056
      %v1058 = vmul.f32 %v1004, 1.442695
      %v1059 = vpow.pop %v1058
      %v1060 = vmul.f32 %v1005, 1.442695
      %v1061 = vpow.pop %v1060
      %v1062 = vmul.f32 %v1006, 1.442695
      %v1063 = vpow.pop %v1062
      %v1064 = vmul.f32 %v1007, 1.442695
      %v1065 = vpow.pop %v1064
      %v1066 = vmul.f32 %v1008, 1.442695
      %v1067 = vpow.pop %v1066
      %v1068 = vmul.f32 %v1009, 1.442695
      %v1069 = vpow.pop %v1068
      %v1070 = vmul.f32 %v1010, 1.442695
      %v1071 = vpow.pop %v1070
      %v1072 = vmul.f32 %v1011, 1.442695
      %v1073 = vpow.pop %v1072
      %v1074 = vmul.f32 %v1012, 1.442695
      %v1075 = vpow.pop %v1074
      %v1076 = vmul.f32 %v1013, 1.442695
      %v1077 = vpow.pop %v1076
      %1079 = vset.pattern.permute.xlu0 0
      %1080 = vperm.xlu0 %1079, %v950
      %v1081 = vpop.permute.xlu0 %1080
      %1084 = vset.pattern.permute.xlu0 0
      %1085 = vperm.xlu0 %1084, %v951
      %v1086 = vpop.permute.xlu0 %1085
      %1089 = vset.pattern.permute.xlu0 0
      %1090 = vperm.xlu0 %1089, %v952
      %v1091 = vpop.permute.xlu0 %1090
      %1094 = vset.pattern.permute.xlu0 0
      %1095 = vperm.xlu0 %1094, %v953
      %v1096 = vpop.permute.xlu0 %1095
      %1099 = vset.pattern.permute.xlu0 0
      %1100 = vperm.xlu0 %1099, %v954
      %v1101 = vpop.permute.xlu0 %1100
      %1104 = vset.pattern.permute.xlu0 0
      %1105 = vperm.xlu0 %1104, %v955
      %v1106 = vpop.permute.xlu0 %1105
      %1109 = vset.pattern.permute.xlu0 0
      %1110 = vperm.xlu0 %1109, %v956
      %v1111 = vpop.permute.xlu0 %1110
      %1114 = vset.pattern.permute.xlu0 0
      %1115 = vperm.xlu0 %1114, %v957
      %v1116 = vpop.permute.xlu0 %1115
      %1119 = vset.pattern.permute.xlu0 0
      %1120 = vperm.xlu0 %1119, %v958
      %v1121 = vpop.permute.xlu0 %1120
      %1124 = vset.pattern.permute.xlu0 0
      %1125 = vperm.xlu0 %1124, %v959
      %v1126 = vpop.permute.xlu0 %1125
      %1129 = vset.pattern.permute.xlu0 0
      %1130 = vperm.xlu0 %1129, %v960
      %v1131 = vpop.permute.xlu0 %1130
      %1134 = vset.pattern.permute.xlu0 0
      %1135 = vperm.xlu0 %1134, %v961
      %v1136 = vpop.permute.xlu0 %1135
      %1139 = vset.pattern.permute.xlu0 0
      %1140 = vperm.xlu0 %1139, %v962
      %v1141 = vpop.permute.xlu0 %1140
      %1144 = vset.pattern.permute.xlu0 0
      %1145 = vperm.xlu0 %1144, %v963
      %v1146 = vpop.permute.xlu0 %1145
      %1149 = vset.pattern.permute.xlu0 0
      %1150 = vperm.xlu0 %1149, %v964
      %v1151 = vpop.permute.xlu0 %1150
      %1154 = vset.pattern.permute.xlu0 0
      %1155 = vperm.xlu0 %1154, %v965
      %v1156 = vpop.permute.xlu0 %1155
      %1159 = vset.pattern.permute.xlu0 0
      %1160 = vperm.xlu0 %1159, %v966
      %v1161 = vpop.permute.xlu0 %1160
      %1164 = vset.pattern.permute.xlu0 0
      %1165 = vperm.xlu0 %1164, %v967
      %v1166 = vpop.permute.xlu0 %1165
      %1169 = vset.pattern.permute.xlu0 0
      %1170 = vperm.xlu0 %1169, %v968
      %v1171 = vpop.permute.xlu0 %1170
      %1174 = vset.pattern.permute.xlu0 0
      %1175 = vperm.xlu0 %1174, %v969
      %v1176 = vpop.permute.xlu0 %1175
      %1179 = vset.pattern.permute.xlu0 0
      %1180 = vperm.xlu0 %1179, %v970
      %v1181 = vpop.permute.xlu0 %1180
      %1184 = vset.pattern.permute.xlu0 0
      %1185 = vperm.xlu0 %1184, %v971
      %v1186 = vpop.permute.xlu0 %1185
      %1189 = vset.pattern.permute.xlu0 0
      %1190 = vperm.xlu0 %1189, %v972
      %v1191 = vpop.permute.xlu0 %1190
      %1194 = vset.pattern.permute.xlu0 0
      %1195 = vperm.xlu0 %1194, %v973
      %v1196 = vpop.permute.xlu0 %1195
      %1199 = vset.pattern.permute.xlu0 0
      %1200 = vperm.xlu0 %1199, %v974
      %v1201 = vpop.permute.xlu0 %1200
      %1204 = vset.pattern.permute.xlu0 0
      %1205 = vperm.xlu0 %1204, %v975
      %v1206 = vpop.permute.xlu0 %1205
      %1209 = vset.pattern.permute.xlu0 0
      %1210 = vperm.xlu0 %1209, %v976
      %v1211 = vpop.permute.xlu0 %1210
      %1214 = vset.pattern.permute.xlu0 0
      %1215 = vperm.xlu0 %1214, %v977
      %v1216 = vpop.permute.xlu0 %1215
      %1219 = vset.pattern.permute.xlu0 0
      %1220 = vperm.xlu0 %1219, %v978
      %v1221 = vpop.permute.xlu0 %1220
      %1224 = vset.pattern.permute.xlu0 0
      %1225 = vperm.xlu0 %1224, %v979
      %v1226 = vpop.permute.xlu0 %1225
      %1229 = vset.pattern.permute.xlu0 0
      %1230 = vperm.xlu0 %1229, %v980
      %v1231 = vpop.permute.xlu0 %1230
      %1234 = vset.pattern.permute.xlu0 0
      %1235 = vperm.xlu0 %1234, %v981
      %v1236 = vpop.permute.xlu0 %1235
      %v1238 = vsub.f32 %v822, %v1081
      %v1239 = vsub.f32 %v823, %v1086
      %v1240 = vsub.f32 %v824, %v1091
      %v1241 = vsub.f32 %v825, %v1096
      %v1242 = vsub.f32 %v826, %v1101
      %v1243 = vsub.f32 %v827, %v1106
      %v1244 = vsub.f32 %v828, %v1111
      %v1245 = vsub.f32 %v829, %v1116
      %v1246 = vsub.f32 %v830, %v1121
      %v1247 = vsub.f32 %v831, %v1126
      %v1248 = vsub.f32 %v832, %v1131
      %v1249 = vsub.f32 %v833, %v1136
      %v1250 = vsub.f32 %v834, %v1141
      %v1251 = vsub.f32 %v835, %v1146
      %v1252 = vsub.f32 %v836, %v1151
      %v1253 = vsub.f32 %v837, %v1156
      %v1254 = vsub.f32 %v838, %v1161
      %v1255 = vsub.f32 %v839, %v1166
      %v1256 = vsub.f32 %v840, %v1171
      %v1257 = vsub.f32 %v841, %v1176
      %v1258 = vsub.f32 %v842, %v1181
      %v1259 = vsub.f32 %v843, %v1186
      %v1260 = vsub.f32 %v844, %v1191
      %v1261 = vsub.f32 %v845, %v1196
      %v1262 = vsub.f32 %v846, %v1201
      %v1263 = vsub.f32 %v847, %v1206
      %v1264 = vsub.f32 %v848, %v1211
      %v1265 = vsub.f32 %v849, %v1216
      %v1266 = vsub.f32 %v850, %v1221
      %v1267 = vsub.f32 %v851, %v1226
      %v1268 = vsub.f32 %v852, %v1231
      %v1269 = vsub.f32 %v853, %v1236
      %v1270 = vmul.f32 %v1238, 1.442695
      %v1271 = vpow.pop %v1270
      %v1272 = vmul.f32 %v1239, 1.442695
      %v1273 = vpow.pop %v1272
      %v1274 = vmul.f32 %v1240, 1.442695
      %v1275 = vpow.pop %v1274
      %v1276 = vmul.f32 %v1241, 1.442695
      %v1277 = vpow.pop %v1276
      %v1278 = vmul.f32 %v1242, 1.442695
      %v1279 = vpow.pop %v1278
      %v1280 = vmul.f32 %v1243, 1.442695
      %v1281 = vpow.pop %v1280
      %v1282 = vmul.f32 %v1244, 1.442695
      %v1283 = vpow.pop %v1282
      %v1284 = vmul.f32 %v1245, 1.442695
      %v1285 = vpow.pop %v1284
      %v1286 = vmul.f32 %v1246, 1.442695
      %v1287 = vpow.pop %v1286
      %v1288 = vmul.f32 %v1247, 1.442695
      %v1289 = vpow.pop %v1288
      %v1290 = vmul.f32 %v1248, 1.442695
      %v1291 = vpow.pop %v1290
      %v1292 = vmul.f32 %v1249, 1.442695
      %v1293 = vpow.pop %v1292
      %v1294 = vmul.f32 %v1250, 1.442695
      %v1295 = vpow.pop %v1294
      %v1296 = vmul.f32 %v1251, 1.442695
      %v1297 = vpow.pop %v1296
      %v1298 = vmul.f32 %v1252, 1.442695
      %v1299 = vpow.pop %v1298
      %v1300 = vmul.f32 %v1253, 1.442695
      %v1301 = vpow.pop %v1300
      %v1302 = vmul.f32 %v1254, 1.442695
      %v1303 = vpow.pop %v1302
      %v1304 = vmul.f32 %v1255, 1.442695
      %v1305 = vpow.pop %v1304
      %v1306 = vmul.f32 %v1256, 1.442695
      %v1307 = vpow.pop %v1306
      %v1308 = vmul.f32 %v1257, 1.442695
      %v1309 = vpow.pop %v1308
      %v1310 = vmul.f32 %v1258, 1.442695
      %v1311 = vpow.pop %v1310
      %v1312 = vmul.f32 %v1259, 1.442695
      %v1313 = vpow.pop %v1312
      %v1314 = vmul.f32 %v1260, 1.442695
      %v1315 = vpow.pop %v1314
      %v1316 = vmul.f32 %v1261, 1.442695
      %v1317 = vpow.pop %v1316
      %v1318 = vmul.f32 %v1262, 1.442695
      %v1319 = vpow.pop %v1318
      %v1320 = vmul.f32 %v1263, 1.442695
      %v1321 = vpow.pop %v1320
      %v1322 = vmul.f32 %v1264, 1.442695
      %v1323 = vpow.pop %v1322
      %v1324 = vmul.f32 %v1265, 1.442695
      %v1325 = vpow.pop %v1324
      %v1326 = vmul.f32 %v1266, 1.442695
      %v1327 = vpow.pop %v1326
      %v1328 = vmul.f32 %v1267, 1.442695
      %v1329 = vpow.pop %v1328
      %v1330 = vmul.f32 %v1268, 1.442695
      %v1331 = vpow.pop %v1330
      %v1332 = vmul.f32 %v1269, 1.442695
      %v1333 = vpow.pop %v1332
      %v1334 = vld [vmem:[#allocation3] sm:$0xff]
      %v1335 = vld [vmem:[#allocation3 + $0x8] sm:$0xff]
      %v1336 = vld [vmem:[#allocation3 + $0x10] sm:$0xff]
      %v1337 = vld [vmem:[#allocation3 + $0x18] sm:$0xff]
      %v1338 = vld [vmem:[#allocation3 + $0x20] sm:$0xff]
      %v1339 = vld [vmem:[#allocation3 + $0x28] sm:$0xff]
      %v1340 = vld [vmem:[#allocation3 + $0x30] sm:$0xff]
      %v1341 = vld [vmem:[#allocation3 + $0x38] sm:$0xff]
      %v1342 = vld [vmem:[#allocation3 + $0x40] sm:$0xff]
      %v1343 = vld [vmem:[#allocation3 + $0x48] sm:$0xff]
      %v1344 = vld [vmem:[#allocation3 + $0x50] sm:$0xff]
      %v1345 = vld [vmem:[#allocation3 + $0x58] sm:$0xff]
      %v1346 = vld [vmem:[#allocation3 + $0x60] sm:$0xff]
      %v1347 = vld [vmem:[#allocation3 + $0x68] sm:$0xff]
      %v1348 = vld [vmem:[#allocation3 + $0x70] sm:$0xff]
      %v1349 = vld [vmem:[#allocation3 + $0x78] sm:$0xff]
      %v1350 = vld [vmem:[#allocation3 + $0x80] sm:$0xff]
      %v1351 = vld [vmem:[#allocation3 + $0x88] sm:$0xff]
      %v1352 = vld [vmem:[#allocation3 + $0x90] sm:$0xff]
      %v1353 = vld [vmem:[#allocation3 + $0x98] sm:$0xff]
      %v1354 = vld [vmem:[#allocation3 + $0xa0] sm:$0xff]
      %v1355 = vld [vmem:[#allocation3 + $0xa8] sm:$0xff]
      %v1356 = vld [vmem:[#allocation3 + $0xb0] sm:$0xff]
      %v1357 = vld [vmem:[#allocation3 + $0xb8] sm:$0xff]
      %v1358 = vld [vmem:[#allocation3 + $0xc0] sm:$0xff]
      %v1359 = vld [vmem:[#allocation3 + $0xc8] sm:$0xff]
      %v1360 = vld [vmem:[#allocation3 + $0xd0] sm:$0xff]
      %v1361 = vld [vmem:[#allocation3 + $0xd8] sm:$0xff]
      %v1362 = vld [vmem:[#allocation3 + $0xe0] sm:$0xff]
      %v1363 = vld [vmem:[#allocation3 + $0xe8] sm:$0xff]
      %v1364 = vld [vmem:[#allocation3 + $0xf0] sm:$0xff]
      %v1365 = vld [vmem:[#allocation3 + $0xf8] sm:$0xff]
      %v1366 = vmul.f32 %v1015, %v1334
      %v1367 = vmul.f32 %v1017, %v1335
      %v1368 = vmul.f32 %v1019, %v1336
      %v1369 = vmul.f32 %v1021, %v1337
      %v1370 = vmul.f32 %v1023, %v1338
      %v1371 = vmul.f32 %v1025, %v1339
      %v1372 = vmul.f32 %v1027, %v1340
      %v1373 = vmul.f32 %v1029, %v1341
      %v1374 = vmul.f32 %v1031, %v1342
      %v1375 = vmul.f32 %v1033, %v1343
      %v1376 = vmul.f32 %v1035, %v1344
      %v1377 = vmul.f32 %v1037, %v1345
      %v1378 = vmul.f32 %v1039, %v1346
      %v1379 = vmul.f32 %v1041, %v1347
      %v1380 = vmul.f32 %v1043, %v1348
      %v1381 = vmul.f32 %v1045, %v1349
      %v1382 = vmul.f32 %v1047, %v1350
      %v1383 = vmul.f32 %v1049, %v1351
      %v1384 = vmul.f32 %v1051, %v1352
      %v1385 = vmul.f32 %v1053, %v1353
      %v1386 = vmul.f32 %v1055, %v1354
      %v1387 = vmul.f32 %v1057, %v1355
      %v1388 = vmul.f32 %v1059, %v1356
      %v1389 = vmul.f32 %v1061, %v1357
      %v1390 = vmul.f32 %v1063, %v1358
      %v1391 = vmul.f32 %v1065, %v1359
      %v1392 = vmul.f32 %v1067, %v1360
      %v1393 = vmul.f32 %v1069, %v1361
      %v1394 = vmul.f32 %v1071, %v1362
      %v1395 = vmul.f32 %v1073, %v1363
      %v1396 = vmul.f32 %v1075, %v1364
      %v1397 = vmul.f32 %v1077, %v1365
      %1398 = vadd.xlane.f32.xlu0 %v1271
      %v1399 = vpop.xlane.xlu0 %1398
      %1400 = vadd.xlane.f32.xlu0 %v1273
      %v1401 = vpop.xlane.xlu0 %1400
      %1402 = vadd.xlane.f32.xlu0 %v1275
      %v1403 = vpop.xlane.xlu0 %1402
      %1404 = vadd.xlane.f32.xlu0 %v1277
      %v1405 = vpop.xlane.xlu0 %1404
      %1406 = vadd.xlane.f32.xlu0 %v1279
      %v1407 = vpop.xlane.xlu0 %1406
      %1408 = vadd.xlane.f32.xlu0 %v1281
      %v1409 = vpop.xlane.xlu0 %1408
      %1410 = vadd.xlane.f32.xlu0 %v1283
      %v1411 = vpop.xlane.xlu0 %1410
      %1412 = vadd.xlane.f32.xlu0 %v1285
      %v1413 = vpop.xlane.xlu0 %1412
      %1414 = vadd.xlane.f32.xlu0 %v1287
      %v1415 = vpop.xlane.xlu0 %1414
      %1416 = vadd.xlane.f32.xlu0 %v1289
      %v1417 = vpop.xlane.xlu0 %1416
      %1418 = vadd.xlane.f32.xlu0 %v1291
      %v1419 = vpop.xlane.xlu0 %1418
      %1420 = vadd.xlane.f32.xlu0 %v1293
      %v1421 = vpop.xlane.xlu0 %1420
      %1422 = vadd.xlane.f32.xlu0 %v1295
      %v1423 = vpop.xlane.xlu0 %1422
      %1424 = vadd.xlane.f32.xlu0 %v1297
      %v1425 = vpop.xlane.xlu0 %1424
      %1426 = vadd.xlane.f32.xlu0 %v1299
      %v1427 = vpop.xlane.xlu0 %1426
      %1428 = vadd.xlane.f32.xlu0 %v1301
      %v1429 = vpop.xlane.xlu0 %1428
      %1430 = vadd.xlane.f32.xlu0 %v1303
      %v1431 = vpop.xlane.xlu0 %1430
      %1432 = vadd.xlane.f32.xlu0 %v1305
      %v1433 = vpop.xlane.xlu0 %1432
      %1434 = vadd.xlane.f32.xlu0 %v1307
      %v1435 = vpop.xlane.xlu0 %1434
      %1436 = vadd.xlane.f32.xlu0 %v1309
      %v1437 = vpop.xlane.xlu0 %1436
      %1438 = vadd.xlane.f32.xlu0 %v1311
      %v1439 = vpop.xlane.xlu0 %1438
      %1440 = vadd.xlane.f32.xlu0 %v1313
      %v1441 = vpop.xlane.xlu0 %1440
      %1442 = vadd.xlane.f32.xlu0 %v1315
      %v1443 = vpop.xlane.xlu0 %1442
      %1444 = vadd.xlane.f32.xlu0 %v1317
      %v1445 = vpop.xlane.xlu0 %1444
      %1446 = vadd.xlane.f32.xlu0 %v1319
      %v1447 = vpop.xlane.xlu0 %1446
      %1448 = vadd.xlane.f32.xlu0 %v1321
      %v1449 = vpop.xlane.xlu0 %1448
      %1450 = vadd.xlane.f32.xlu0 %v1323
      %v1451 = vpop.xlane.xlu0 %1450
      %1452 = vadd.xlane.f32.xlu0 %v1325
      %v1453 = vpop.xlane.xlu0 %1452
      %1454 = vadd.xlane.f32.xlu0 %v1327
      %v1455 = vpop.xlane.xlu0 %1454
      %1456 = vadd.xlane.f32.xlu0 %v1329
      %v1457 = vpop.xlane.xlu0 %1456
      %1458 = vadd.xlane.f32.xlu0 %v1331
      %v1459 = vpop.xlane.xlu0 %1458
      %1460 = vadd.xlane.f32.xlu0 %v1333
      %v1461 = vpop.xlane.xlu0 %1460
      %v1462 = vadd.f32 %v1366, %v1399
      %v1463 = vadd.f32 %v1367, %v1401
      %v1464 = vadd.f32 %v1368, %v1403
      %v1465 = vadd.f32 %v1369, %v1405
      %v1466 = vadd.f32 %v1370, %v1407
      %v1467 = vadd.f32 %v1371, %v1409
      %v1468 = vadd.f32 %v1372, %v1411
      %v1469 = vadd.f32 %v1373, %v1413
      %v1470 = vadd.f32 %v1374, %v1415
      %v1471 = vadd.f32 %v1375, %v1417
      %v1472 = vadd.f32 %v1376, %v1419
      %v1473 = vadd.f32 %v1377, %v1421
      %v1474 = vadd.f32 %v1378, %v1423
      %v1475 = vadd.f32 %v1379, %v1425
      %v1476 = vadd.f32 %v1380, %v1427
      %v1477 = vadd.f32 %v1381, %v1429
      %v1478 = vadd.f32 %v1382, %v1431
      %v1479 = vadd.f32 %v1383, %v1433
      %v1480 = vadd.f32 %v1384, %v1435
      %v1481 = vadd.f32 %v1385, %v1437
      %v1482 = vadd.f32 %v1386, %v1439
      %v1483 = vadd.f32 %v1387, %v1441
      %v1484 = vadd.f32 %v1388, %v1443
      %v1485 = vadd.f32 %v1389, %v1445
      %v1486 = vadd.f32 %v1390, %v1447
      %v1487 = vadd.f32 %v1391, %v1449
      %v1488 = vadd.f32 %v1392, %v1451
      %v1489 = vadd.f32 %v1393, %v1453
      %v1490 = vadd.f32 %v1394, %v1455
      %v1491 = vadd.f32 %v1395, %v1457
      %v1492 = vadd.f32 %v1396, %v1459
      %v1493 = vadd.f32 %v1397, %v1461
      %vm1494 = vcmask 7168
      %1495 = vst.msk [vmem:[#allocation3] sm:$0xff] %vm1494, %v1462
      %1496 = vst.msk [vmem:[#allocation3 + $0x8] sm:$0xff] %vm1494, %v1463
      %1497 = vst.msk [vmem:[#allocation3 + $0x10] sm:$0xff] %vm1494, %v1464
      %1498 = vst.msk [vmem:[#allocation3 + $0x18] sm:$0xff] %vm1494, %v1465
      %1499 = vst.msk [vmem:[#allocation3 + $0x20] sm:$0xff] %vm1494, %v1466
      %1500 = vst.msk [vmem:[#allocation3 + $0x28] sm:$0xff] %vm1494, %v1467
      %1501 = vst.msk [vmem:[#allocation3 + $0x30] sm:$0xff] %vm1494, %v1468
      %1502 = vst.msk [vmem:[#allocation3 + $0x38] sm:$0xff] %vm1494, %v1469
      %1503 = vst.msk [vmem:[#allocation3 + $0x40] sm:$0xff] %vm1494, %v1470
      %1504 = vst.msk [vmem:[#allocation3 + $0x48] sm:$0xff] %vm1494, %v1471
      %1505 = vst.msk [vmem:[#allocation3 + $0x50] sm:$0xff] %vm1494, %v1472
      %1506 = vst.msk [vmem:[#allocation3 + $0x58] sm:$0xff] %vm1494, %v1473
      %1507 = vst.msk [vmem:[#allocation3 + $0x60] sm:$0xff] %vm1494, %v1474
      %1508 = vst.msk [vmem:[#allocation3 + $0x68] sm:$0xff] %vm1494, %v1475
      %1509 = vst.msk [vmem:[#allocation3 + $0x70] sm:$0xff] %vm1494, %v1476
      %1510 = vst.msk [vmem:[#allocation3 + $0x78] sm:$0xff] %vm1494, %v1477
      %1511 = vst.msk [vmem:[#allocation3 + $0x80] sm:$0xff] %vm1494, %v1478
      %1512 = vst.msk [vmem:[#allocation3 + $0x88] sm:$0xff] %vm1494, %v1479
      %1513 = vst.msk [vmem:[#allocation3 + $0x90] sm:$0xff] %vm1494, %v1480
      %1514 = vst.msk [vmem:[#allocation3 + $0x98] sm:$0xff] %vm1494, %v1481
      %1515 = vst.msk [vmem:[#allocation3 + $0xa0] sm:$0xff] %vm1494, %v1482
      %1516 = vst.msk [vmem:[#allocation3 + $0xa8] sm:$0xff] %vm1494, %v1483
      %1517 = vst.msk [vmem:[#allocation3 + $0xb0] sm:$0xff] %vm1494, %v1484
      %1518 = vst.msk [vmem:[#allocation3 + $0xb8] sm:$0xff] %vm1494, %v1485
      %1519 = vst.msk [vmem:[#allocation3 + $0xc0] sm:$0xff] %vm1494, %v1486
      %1520 = vst.msk [vmem:[#allocation3 + $0xc8] sm:$0xff] %vm1494, %v1487
      %1521 = vst.msk [vmem:[#allocation3 + $0xd0] sm:$0xff] %vm1494, %v1488
      %1522 = vst.msk [vmem:[#allocation3 + $0xd8] sm:$0xff] %vm1494, %v1489
      %1523 = vst.msk [vmem:[#allocation3 + $0xe0] sm:$0xff] %vm1494, %v1490
      %1524 = vst.msk [vmem:[#allocation3 + $0xe8] sm:$0xff] %vm1494, %v1491
      %1525 = vst.msk [vmem:[#allocation3 + $0xf0] sm:$0xff] %vm1494, %v1492
      %1526 = vst.msk [vmem:[#allocation3 + $0xf8] sm:$0xff] %vm1494, %v1493
      %v1527 = vld [vmem:[#allocation4] sm:$0xff]
      %v1528 = vld [vmem:[#allocation4 + $0x8] sm:$0xff]
      %v1529 = vld [vmem:[#allocation4 + $0x10] sm:$0xff]
      %v1530 = vld [vmem:[#allocation4 + $0x18] sm:$0xff]
      %v1531 = vld [vmem:[#allocation4 + $0x20] sm:$0xff]
      %v1532 = vld [vmem:[#allocation4 + $0x28] sm:$0xff]
      %v1533 = vld [vmem:[#allocation4 + $0x30] sm:$0xff]
      %v1534 = vld [vmem:[#allocation4 + $0x38] sm:$0xff]
      %v1535 = vld [vmem:[#allocation4 + $0x40] sm:$0xff]
      %v1536 = vld [vmem:[#allocation4 + $0x48] sm:$0xff]
      %v1537 = vld [vmem:[#allocation4 + $0x50] sm:$0xff]
      %v1538 = vld [vmem:[#allocation4 + $0x58] sm:$0xff]
      %v1539 = vld [vmem:[#allocation4 + $0x60] sm:$0xff]
      %v1540 = vld [vmem:[#allocation4 + $0x68] sm:$0xff]
      %v1541 = vld [vmem:[#allocation4 + $0x70] sm:$0xff]
      %v1542 = vld [vmem:[#allocation4 + $0x78] sm:$0xff]
      %v1543 = vld [vmem:[#allocation4 + $0x80] sm:$0xff]
      %v1544 = vld [vmem:[#allocation4 + $0x88] sm:$0xff]
      %v1545 = vld [vmem:[#allocation4 + $0x90] sm:$0xff]
      %v1546 = vld [vmem:[#allocation4 + $0x98] sm:$0xff]
      %v1547 = vld [vmem:[#allocation4 + $0xa0] sm:$0xff]
      %v1548 = vld [vmem:[#allocation4 + $0xa8] sm:$0xff]
      %v1549 = vld [vmem:[#allocation4 + $0xb0] sm:$0xff]
      %v1550 = vld [vmem:[#allocation4 + $0xb8] sm:$0xff]
      %v1551 = vld [vmem:[#allocation4 + $0xc0] sm:$0xff]
      %v1552 = vld [vmem:[#allocation4 + $0xc8] sm:$0xff]
      %v1553 = vld [vmem:[#allocation4 + $0xd0] sm:$0xff]
      %v1554 = vld [vmem:[#allocation4 + $0xd8] sm:$0xff]
      %v1555 = vld [vmem:[#allocation4 + $0xe0] sm:$0xff]
      %v1556 = vld [vmem:[#allocation4 + $0xe8] sm:$0xff]
      %v1557 = vld [vmem:[#allocation4 + $0xf0] sm:$0xff]
      %v1558 = vld [vmem:[#allocation4 + $0xf8] sm:$0xff]
      %1560 = vset.pattern.permute.xlu0 0
      %1561 = vperm.xlu0 %1560, %v1015
      %v1562 = vpop.permute.xlu0 %1561
      %1565 = vset.pattern.permute.xlu0 0
      %1566 = vperm.xlu0 %1565, %v1017
      %v1567 = vpop.permute.xlu0 %1566
      %1570 = vset.pattern.permute.xlu0 0
      %1571 = vperm.xlu0 %1570, %v1019
      %v1572 = vpop.permute.xlu0 %1571
      %1575 = vset.pattern.permute.xlu0 0
      %1576 = vperm.xlu0 %1575, %v1021
      %v1577 = vpop.permute.xlu0 %1576
      %1580 = vset.pattern.permute.xlu0 0
      %1581 = vperm.xlu0 %1580, %v1023
      %v1582 = vpop.permute.xlu0 %1581
      %1585 = vset.pattern.permute.xlu0 0
      %1586 = vperm.xlu0 %1585, %v1025
      %v1587 = vpop.permute.xlu0 %1586
      %1590 = vset.pattern.permute.xlu0 0
      %1591 = vperm.xlu0 %1590, %v1027
      %v1592 = vpop.permute.xlu0 %1591
      %1595 = vset.pattern.permute.xlu0 0
      %1596 = vperm.xlu0 %1595, %v1029
      %v1597 = vpop.permute.xlu0 %1596
      %1600 = vset.pattern.permute.xlu0 0
      %1601 = vperm.xlu0 %1600, %v1031
      %v1602 = vpop.permute.xlu0 %1601
      %1605 = vset.pattern.permute.xlu0 0
      %1606 = vperm.xlu0 %1605, %v1033
      %v1607 = vpop.permute.xlu0 %1606
      %1610 = vset.pattern.permute.xlu0 0
      %1611 = vperm.xlu0 %1610, %v1035
      %v1612 = vpop.permute.xlu0 %1611
      %1615 = vset.pattern.permute.xlu0 0
      %1616 = vperm.xlu0 %1615, %v1037
      %v1617 = vpop.permute.xlu0 %1616
      %1620 = vset.pattern.permute.xlu0 0
      %1621 = vperm.xlu0 %1620, %v1039
      %v1622 = vpop.permute.xlu0 %1621
      %1625 = vset.pattern.permute.xlu0 0
      %1626 = vperm.xlu0 %1625, %v1041
      %v1627 = vpop.permute.xlu0 %1626
      %1630 = vset.pattern.permute.xlu0 0
      %1631 = vperm.xlu0 %1630, %v1043
      %v1632 = vpop.permute.xlu0 %1631
      %1635 = vset.pattern.permute.xlu0 0
      %1636 = vperm.xlu0 %1635, %v1045
      %v1637 = vpop.permute.xlu0 %1636
      %1640 = vset.pattern.permute.xlu0 0
      %1641 = vperm.xlu0 %1640, %v1047
      %v1642 = vpop.permute.xlu0 %1641
      %1645 = vset.pattern.permute.xlu0 0
      %1646 = vperm.xlu0 %1645, %v1049
      %v1647 = vpop.permute.xlu0 %1646
      %1650 = vset.pattern.permute.xlu0 0
      %1651 = vperm.xlu0 %1650, %v1051
      %v1652 = vpop.permute.xlu0 %1651
      %1655 = vset.pattern.permute.xlu0 0
      %1656 = vperm.xlu0 %1655, %v1053
      %v1657 = vpop.permute.xlu0 %1656
      %1660 = vset.pattern.permute.xlu0 0
      %1661 = vperm.xlu0 %1660, %v1055
      %v1662 = vpop.permute.xlu0 %1661
      %1665 = vset.pattern.permute.xlu0 0
      %1666 = vperm.xlu0 %1665, %v1057
      %v1667 = vpop.permute.xlu0 %1666
      %1670 = vset.pattern.permute.xlu0 0
      %1671 = vperm.xlu0 %1670, %v1059
      %v1672 = vpop.permute.xlu0 %1671
      %1675 = vset.pattern.permute.xlu0 0
      %1676 = vperm.xlu0 %1675, %v1061
      %v1677 = vpop.permute.xlu0 %1676
      %1680 = vset.pattern.permute.xlu0 0
      %1681 = vperm.xlu0 %1680, %v1063
      %v1682 = vpop.permute.xlu0 %1681
      %1685 = vset.pattern.permute.xlu0 0
      %1686 = vperm.xlu0 %1685, %v1065
      %v1687 = vpop.permute.xlu0 %1686
      %1690 = vset.pattern.permute.xlu0 0
      %1691 = vperm.xlu0 %1690, %v1067
      %v1692 = vpop.permute.xlu0 %1691
      %1695 = vset.pattern.permute.xlu0 0
      %1696 = vperm.xlu0 %1695, %v1069
      %v1697 = vpop.permute.xlu0 %1696
      %1700 = vset.pattern.permute.xlu0 0
      %1701 = vperm.xlu0 %1700, %v1071
      %v1702 = vpop.permute.xlu0 %1701
      %1705 = vset.pattern.permute.xlu0 0
      %1706 = vperm.xlu0 %1705, %v1073
      %v1707 = vpop.permute.xlu0 %1706
      %1710 = vset.pattern.permute.xlu0 0
      %1711 = vperm.xlu0 %1710, %v1075
      %v1712 = vpop.permute.xlu0 %1711
      %1715 = vset.pattern.permute.xlu0 0
      %1716 = vperm.xlu0 %1715, %v1077
      %v1717 = vpop.permute.xlu0 %1716
      %v1719 = vmul.f32 %v1562, %v1527
      %v1720 = vmul.f32 %v1567, %v1528
      %v1721 = vmul.f32 %v1572, %v1529
      %v1722 = vmul.f32 %v1577, %v1530
      %v1723 = vmul.f32 %v1582, %v1531
      %v1724 = vmul.f32 %v1587, %v1532
      %v1725 = vmul.f32 %v1592, %v1533
      %v1726 = vmul.f32 %v1597, %v1534
      %v1727 = vmul.f32 %v1602, %v1535
      %v1728 = vmul.f32 %v1607, %v1536
      %v1729 = vmul.f32 %v1612, %v1537
      %v1730 = vmul.f32 %v1617, %v1538
      %v1731 = vmul.f32 %v1622, %v1539
      %v1732 = vmul.f32 %v1627, %v1540
      %v1733 = vmul.f32 %v1632, %v1541
      %v1734 = vmul.f32 %v1637, %v1542
      %v1735 = vmul.f32 %v1642, %v1543
      %v1736 = vmul.f32 %v1647, %v1544
      %v1737 = vmul.f32 %v1652, %v1545
      %v1738 = vmul.f32 %v1657, %v1546
      %v1739 = vmul.f32 %v1662, %v1547
      %v1740 = vmul.f32 %v1667, %v1548
      %v1741 = vmul.f32 %v1672, %v1549
      %v1742 = vmul.f32 %v1677, %v1550
      %v1743 = vmul.f32 %v1682, %v1551
      %v1744 = vmul.f32 %v1687, %v1552
      %v1745 = vmul.f32 %v1692, %v1553
      %v1746 = vmul.f32 %v1697, %v1554
      %v1747 = vmul.f32 %v1702, %v1555
      %v1748 = vmul.f32 %v1707, %v1556
      %v1749 = vmul.f32 %v1712, %v1557
      %v1750 = vmul.f32 %v1717, %v1558
      %v1751 = vpack.c.bf16 %v1273, %v1271
      %v1752 = vpack.c.bf16 %v1277, %v1275
      %v1753 = vpack.c.bf16 %v1281, %v1279
      %v1754 = vpack.c.bf16 %v1285, %v1283
      %v1755 = vpack.c.bf16 %v1289, %v1287
      %v1756 = vpack.c.bf16 %v1293, %v1291
      %v1757 = vpack.c.bf16 %v1297, %v1295
      %v1758 = vpack.c.bf16 %v1301, %v1299
      %v1759 = vpack.c.bf16 %v1305, %v1303
      %v1760 = vpack.c.bf16 %v1309, %v1307
      %v1761 = vpack.c.bf16 %v1313, %v1311
      %v1762 = vpack.c.bf16 %v1317, %v1315
      %v1763 = vpack.c.bf16 %v1321, %v1319
      %v1764 = vpack.c.bf16 %v1325, %v1323
      %v1765 = vpack.c.bf16 %v1329, %v1327
      %v1766 = vpack.c.bf16 %v1333, %v1331
      %v1783 = vunpack.c.l.b16 %v419
      %v1784 = vunpack.c.l.b16 %v420
      %v1785 = vunpack.c.l.b16 %v421
      %v1786 = vunpack.c.l.b16 %v422
      %v1787 = vunpack.c.l.b16 %v423
      %v1788 = vunpack.c.l.b16 %v424
      %v1789 = vunpack.c.l.b16 %v425
      %v1790 = vunpack.c.l.b16 %v426
      %v1791 = vunpack.c.l.b16 %v427
      %v1792 = vunpack.c.l.b16 %v428
      %v1793 = vunpack.c.l.b16 %v429
      %v1794 = vunpack.c.l.b16 %v430
      %v1795 = vunpack.c.l.b16 %v431
      %v1796 = vunpack.c.l.b16 %v432
      %v1797 = vunpack.c.l.b16 %v433
      %v1798 = vunpack.c.l.b16 %v434
      %v1799 = vpack.c.b16 %v1784, %v1783
      %v1800 = vpack.c.b16 %v1786, %v1785
      %v1801 = vpack.c.b16 %v1788, %v1787
      %v1802 = vpack.c.b16 %v1790, %v1789
      %v1803 = vpack.c.b16 %v1792, %v1791
      %v1804 = vpack.c.b16 %v1794, %v1793
      %v1805 = vpack.c.b16 %v1796, %v1795
      %v1806 = vpack.c.b16 %v1798, %v1797
      %1815 = vmatprep.subr.bf16.mxu0 0
      %1816 = vmatpush1.bf16.msra.mxu0 %v1806
      %1817 = vmatprep.subr.bf16.mxu0 0
      %1818 = vmatpush1.bf16.msra.mxu0 %v1805
      %1819 = vmatprep.subr.bf16.mxu0 0
      %1820 = vmatpush1.bf16.msra.mxu0 %v1804
      %1821 = vmatprep.subr.bf16.mxu0 0
      %1822 = vmatpush1.bf16.msra.mxu0 %v1803
      %1823 = vmatprep.subr.bf16.mxu0 0
      %1824 = vmatpush1.bf16.msra.mxu0 %v1802
      %1825 = vmatprep.subr.bf16.mxu0 0
      %1826 = vmatpush1.bf16.msra.mxu0 %v1801
      %1827 = vmatprep.subr.bf16.mxu0 0
      %1828 = vmatpush1.bf16.msra.mxu0 %v1800
      %1829 = vmatprep.subr.bf16.mxu0 0
      %1830 = vmatpush1.bf16.msra.mxu0 %v1799
      %1831 = vmatprep.subr.bf16.mxu0 0
      %1832 = vmatpush2.bf16.msra.mxu0 0
      %1833 = vmatprep.subr.bf16.mxu0 0
      %1834 = vmatpush2.bf16.msra.mxu0 0
      %1835 = vmatprep.subr.bf16.mxu0 0
      %1836 = vmatpush2.bf16.msra.mxu0 0
      %1837 = vmatprep.subr.bf16.mxu0 0
      %1838 = vmatpush2.bf16.msra.mxu0 0
      %1839 = vmatprep.subr.bf16.mxu0 0
      %1840 = vmatpush2.bf16.msra.mxu0 0
      %1841 = vmatprep.subr.bf16.mxu0 0
      %1842 = vmatpush2.bf16.msra.mxu0 0
      %1843 = vmatprep.subr.bf16.mxu0 0
      %1844 = vmatpush2.bf16.msra.mxu0 0
      %1845 = vmatprep.subr.bf16.mxu0 0
      %1846 = vmatpush2.bf16.msra.mxu0 0
      %1847 = vmatprep.mubr.bf16.mxu0 0
      %1848 = vmatmul.mubr.bf16.gmra.mxu0 %v1751
      %v1849 = vpop.f32.mrf.mxu0
      %v1850 = vadd.f32 0.0, %v1849
      %v1851 = vpop.f32.mrf.mxu0
      %v1852 = vpop.f32.mrf.mxu0
      %v1853 = vadd.f32 0.0, %v1852
      %v1854 = vpop.f32.mrf.mxu0
      %1855 = vmatprep.mubr.bf16.mxu0 0
      %1856 = vmatmul.mubr.bf16.gmra.mxu0 %v1752
      %v1857 = vpop.f32.mrf.mxu0
      %v1858 = vadd.f32 0.0, %v1857
      %v1859 = vpop.f32.mrf.mxu0
      %v1860 = vpop.f32.mrf.mxu0
      %v1861 = vadd.f32 0.0, %v1860
      %v1862 = vpop.f32.mrf.mxu0
      %1863 = vmatprep.mubr.bf16.mxu0 0
      %1864 = vmatmul.mubr.bf16.gmra.mxu0 %v1753
      %v1865 = vpop.f32.mrf.mxu0
      %v1866 = vadd.f32 0.0, %v1865
      %v1867 = vpop.f32.mrf.mxu0
      %v1868 = vpop.f32.mrf.mxu0
      %v1869 = vadd.f32 0.0, %v1868
      %v1870 = vpop.f32.mrf.mxu0
      %1871 = vmatprep.mubr.bf16.mxu0 0
      %1872 = vmatmul.mubr.bf16.gmra.mxu0 %v1754
      %v1873 = vpop.f32.mrf.mxu0
      %v1874 = vadd.f32 0.0, %v1873
      %v1875 = vpop.f32.mrf.mxu0
      %v1876 = vpop.f32.mrf.mxu0
      %v1877 = vadd.f32 0.0, %v1876
      %v1878 = vpop.f32.mrf.mxu0
      %1879 = vmatprep.mubr.bf16.mxu0 0
      %1880 = vmatmul.mubr.bf16.gmra.mxu0 %v1755
      %v1881 = vpop.f32.mrf.mxu0
      %v1882 = vadd.f32 0.0, %v1881
      %v1883 = vpop.f32.mrf.mxu0
      %v1884 = vpop.f32.mrf.mxu0
      %v1885 = vadd.f32 0.0, %v1884
      %v1886 = vpop.f32.mrf.mxu0
      %1887 = vmatprep.mubr.bf16.mxu0 0
      %1888 = vmatmul.mubr.bf16.gmra.mxu0 %v1756
      %v1889 = vpop.f32.mrf.mxu0
      %v1890 = vadd.f32 0.0, %v1889
      %v1891 = vpop.f32.mrf.mxu0
      %v1892 = vpop.f32.mrf.mxu0
      %v1893 = vadd.f32 0.0, %v1892
      %v1894 = vpop.f32.mrf.mxu0
      %1895 = vmatprep.mubr.bf16.mxu0 0
      %1896 = vmatmul.mubr.bf16.gmra.mxu0 %v1757
      %v1897 = vpop.f32.mrf.mxu0
      %v1898 = vadd.f32 0.0, %v1897
      %v1899 = vpop.f32.mrf.mxu0
      %v1900 = vpop.f32.mrf.mxu0
      %v1901 = vadd.f32 0.0, %v1900
      %v1902 = vpop.f32.mrf.mxu0
      %1903 = vmatprep.mubr.bf16.mxu0 0
      %1904 = vmatmul.mubr.bf16.gmra.mxu0 %v1758
      %v1905 = vpop.f32.mrf.mxu0
      %v1906 = vadd.f32 0.0, %v1905
      %v1907 = vpop.f32.mrf.mxu0
      %v1908 = vpop.f32.mrf.mxu0
      %v1909 = vadd.f32 0.0, %v1908
      %v1910 = vpop.f32.mrf.mxu0
      %1911 = vdwg.mxu0
      %v1928 = vunpack.c.l.b16 %v435
      %v1929 = vunpack.c.l.b16 %v436
      %v1930 = vunpack.c.l.b16 %v437
      %v1931 = vunpack.c.l.b16 %v438
      %v1932 = vunpack.c.l.b16 %v439
      %v1933 = vunpack.c.l.b16 %v440
      %v1934 = vunpack.c.l.b16 %v441
      %v1935 = vunpack.c.l.b16 %v442
      %v1936 = vunpack.c.l.b16 %v443
      %v1937 = vunpack.c.l.b16 %v444
      %v1938 = vunpack.c.l.b16 %v445
      %v1939 = vunpack.c.l.b16 %v446
      %v1940 = vunpack.c.l.b16 %v447
      %v1941 = vunpack.c.l.b16 %v448
      %v1942 = vunpack.c.l.b16 %v449
      %v1943 = vunpack.c.l.b16 %v450
      %v1944 = vpack.c.b16 %v1929, %v1928
      %v1945 = vpack.c.b16 %v1931, %v1930
      %v1946 = vpack.c.b16 %v1933, %v1932
      %v1947 = vpack.c.b16 %v1935, %v1934
      %v1948 = vpack.c.b16 %v1937, %v1936
      %v1949 = vpack.c.b16 %v1939, %v1938
      %v1950 = vpack.c.b16 %v1941, %v1940
      %v1951 = vpack.c.b16 %v1943, %v1942
      %1960 = vmatprep.subr.bf16.mxu0 0
      %1961 = vmatpush1.bf16.msra.mxu0 %v1951
      %1962 = vmatprep.subr.bf16.mxu0 0
      %1963 = vmatpush1.bf16.msra.mxu0 %v1950
      %1964 = vmatprep.subr.bf16.mxu0 0
      %1965 = vmatpush1.bf16.msra.mxu0 %v1949
      %1966 = vmatprep.subr.bf16.mxu0 0
      %1967 = vmatpush1.bf16.msra.mxu0 %v1948
      %1968 = vmatprep.subr.bf16.mxu0 0
      %1969 = vmatpush1.bf16.msra.mxu0 %v1947
      %1970 = vmatprep.subr.bf16.mxu0 0
      %1971 = vmatpush1.bf16.msra.mxu0 %v1946
      %1972 = vmatprep.subr.bf16.mxu0 0
      %1973 = vmatpush1.bf16.msra.mxu0 %v1945
      %1974 = vmatprep.subr.bf16.mxu0 0
      %1975 = vmatpush1.bf16.msra.mxu0 %v1944
      %1976 = vmatprep.subr.bf16.mxu0 0
      %1977 = vmatpush2.bf16.msra.mxu0 0
      %1978 = vmatprep.subr.bf16.mxu0 0
      %1979 = vmatpush2.bf16.msra.mxu0 0
      %1980 = vmatprep.subr.bf16.mxu0 0
      %1981 = vmatpush2.bf16.msra.mxu0 0
      %1982 = vmatprep.subr.bf16.mxu0 0
      %1983 = vmatpush2.bf16.msra.mxu0 0
      %1984 = vmatprep.subr.bf16.mxu0 0
      %1985 = vmatpush2.bf16.msra.mxu0 0
      %1986 = vmatprep.subr.bf16.mxu0 0
      %1987 = vmatpush2.bf16.msra.mxu0 0
      %1988 = vmatprep.subr.bf16.mxu0 0
      %1989 = vmatpush2.bf16.msra.mxu0 0
      %1990 = vmatprep.subr.bf16.mxu0 0
      %1991 = vmatpush2.bf16.msra.mxu0 0
      %1992 = vmatprep.mubr.bf16.mxu0 0
      %1993 = vmatmul.mubr.bf16.gmra.mxu0 %v1759
      %v1994 = vpop.f32.mrf.mxu0
      %v1995 = vadd.f32 0.0, %v1994
      %v1996 = vpop.f32.mrf.mxu0
      %v1997 = vpop.f32.mrf.mxu0
      %v1998 = vadd.f32 0.0, %v1997
      %v1999 = vpop.f32.mrf.mxu0
      %2000 = vmatprep.mubr.bf16.mxu0 0
      %2001 = vmatmul.mubr.bf16.gmra.mxu0 %v1760
      %v2002 = vpop.f32.mrf.mxu0
      %v2003 = vadd.f32 0.0, %v2002
      %v2004 = vpop.f32.mrf.mxu0
      %v2005 = vpop.f32.mrf.mxu0
      %v2006 = vadd.f32 0.0, %v2005
      %v2007 = vpop.f32.mrf.mxu0
      %2008 = vmatprep.mubr.bf16.mxu0 0
      %2009 = vmatmul.mubr.bf16.gmra.mxu0 %v1761
      %v2010 = vpop.f32.mrf.mxu0
      %v2011 = vadd.f32 0.0, %v2010
      %v2012 = vpop.f32.mrf.mxu0
      %v2013 = vpop.f32.mrf.mxu0
      %v2014 = vadd.f32 0.0, %v2013
      %v2015 = vpop.f32.mrf.mxu0
      %2016 = vmatprep.mubr.bf16.mxu0 0
      %2017 = vmatmul.mubr.bf16.gmra.mxu0 %v1762
      %v2018 = vpop.f32.mrf.mxu0
      %v2019 = vadd.f32 0.0, %v2018
      %v2020 = vpop.f32.mrf.mxu0
      %v2021 = vpop.f32.mrf.mxu0
      %v2022 = vadd.f32 0.0, %v2021
      %v2023 = vpop.f32.mrf.mxu0
      %2024 = vmatprep.mubr.bf16.mxu0 0
      %2025 = vmatmul.mubr.bf16.gmra.mxu0 %v1763
      %v2026 = vpop.f32.mrf.mxu0
      %v2027 = vadd.f32 0.0, %v2026
      %v2028 = vpop.f32.mrf.mxu0
      %v2029 = vpop.f32.mrf.mxu0
      %v2030 = vadd.f32 0.0, %v2029
      %v2031 = vpop.f32.mrf.mxu0
      %2032 = vmatprep.mubr.bf16.mxu0 0
      %2033 = vmatmul.mubr.bf16.gmra.mxu0 %v1764
      %v2034 = vpop.f32.mrf.mxu0
      %v2035 = vadd.f32 0.0, %v2034
      %v2036 = vpop.f32.mrf.mxu0
      %v2037 = vpop.f32.mrf.mxu0
      %v2038 = vadd.f32 0.0, %v2037
      %v2039 = vpop.f32.mrf.mxu0
      %2040 = vmatprep.mubr.bf16.mxu0 0
      %2041 = vmatmul.mubr.bf16.gmra.mxu0 %v1765
      %v2042 = vpop.f32.mrf.mxu0
      %v2043 = vadd.f32 0.0, %v2042
      %v2044 = vpop.f32.mrf.mxu0
      %v2045 = vpop.f32.mrf.mxu0
      %v2046 = vadd.f32 0.0, %v2045
      %v2047 = vpop.f32.mrf.mxu0
      %2048 = vmatprep.mubr.bf16.mxu0 0
      %2049 = vmatmul.mubr.bf16.gmra.mxu0 %v1766
      %v2050 = vpop.f32.mrf.mxu0
      %v2051 = vadd.f32 0.0, %v2050
      %v2052 = vpop.f32.mrf.mxu0
      %v2053 = vpop.f32.mrf.mxu0
      %v2054 = vadd.f32 0.0, %v2053
      %v2055 = vpop.f32.mrf.mxu0
      %2056 = vdwg.mxu0
      %v2057 = vadd.f32 %v1719, %v1850
      %v2058 = vadd.f32 %v1720, %v1853
      %v2059 = vadd.f32 %v1721, %v1858
      %v2060 = vadd.f32 %v1722, %v1861
      %v2061 = vadd.f32 %v1723, %v1866
      %v2062 = vadd.f32 %v1724, %v1869
      %v2063 = vadd.f32 %v1725, %v1874
      %v2064 = vadd.f32 %v1726, %v1877
      %v2065 = vadd.f32 %v1727, %v1882
      %v2066 = vadd.f32 %v1728, %v1885
      %v2067 = vadd.f32 %v1729, %v1890
      %v2068 = vadd.f32 %v1730, %v1893
      %v2069 = vadd.f32 %v1731, %v1898
      %v2070 = vadd.f32 %v1732, %v1901
      %v2071 = vadd.f32 %v1733, %v1906
      %v2072 = vadd.f32 %v1734, %v1909
      %v2073 = vadd.f32 %v1735, %v1995
      %v2074 = vadd.f32 %v1736, %v1998
      %v2075 = vadd.f32 %v1737, %v2003
      %v2076 = vadd.f32 %v1738, %v2006
      %v2077 = vadd.f32 %v1739, %v2011
      %v2078 = vadd.f32 %v1740, %v2014
      %v2079 = vadd.f32 %v1741, %v2019
      %v2080 = vadd.f32 %v1742, %v2022
      %v2081 = vadd.f32 %v1743, %v2027
      %v2082 = vadd.f32 %v1744, %v2030
      %v2083 = vadd.f32 %v1745, %v2035
      %v2084 = vadd.f32 %v1746, %v2038
      %v2085 = vadd.f32 %v1747, %v2043
      %v2086 = vadd.f32 %v1748, %v2046
      %v2087 = vadd.f32 %v1749, %v2051
      %v2088 = vadd.f32 %v1750, %v2054
      %2089 = vst.msk [vmem:[#allocation4] sm:$0xff] %vm515, %v2057
      %2090 = vst.msk [vmem:[#allocation4 + $0x8] sm:$0xff] %vm515, %v2058
      %2091 = vst.msk [vmem:[#allocation4 + $0x10] sm:$0xff] %vm515, %v2059
      %2092 = vst.msk [vmem:[#allocation4 + $0x18] sm:$0xff] %vm515, %v2060
      %2093 = vst.msk [vmem:[#allocation4 + $0x20] sm:$0xff] %vm515, %v2061
      %2094 = vst.msk [vmem:[#allocation4 + $0x28] sm:$0xff] %vm515, %v2062
      %2095 = vst.msk [vmem:[#allocation4 + $0x30] sm:$0xff] %vm515, %v2063
      %2096 = vst.msk [vmem:[#allocation4 + $0x38] sm:$0xff] %vm515, %v2064
      %2097 = vst.msk [vmem:[#allocation4 + $0x40] sm:$0xff] %vm515, %v2065
      %2098 = vst.msk [vmem:[#allocation4 + $0x48] sm:$0xff] %vm515, %v2066
      %2099 = vst.msk [vmem:[#allocation4 + $0x50] sm:$0xff] %vm515, %v2067
      %2100 = vst.msk [vmem:[#allocation4 + $0x58] sm:$0xff] %vm515, %v2068
      %2101 = vst.msk [vmem:[#allocation4 + $0x60] sm:$0xff] %vm515, %v2069
      %2102 = vst.msk [vmem:[#allocation4 + $0x68] sm:$0xff] %vm515, %v2070
      %2103 = vst.msk [vmem:[#allocation4 + $0x70] sm:$0xff] %vm515, %v2071
      %2104 = vst.msk [vmem:[#allocation4 + $0x78] sm:$0xff] %vm515, %v2072
      %2105 = vst.msk [vmem:[#allocation4 + $0x80] sm:$0xff] %vm515, %v2073
      %2106 = vst.msk [vmem:[#allocation4 + $0x88] sm:$0xff] %vm515, %v2074
      %2107 = vst.msk [vmem:[#allocation4 + $0x90] sm:$0xff] %vm515, %v2075
      %2108 = vst.msk [vmem:[#allocation4 + $0x98] sm:$0xff] %vm515, %v2076
      %2109 = vst.msk [vmem:[#allocation4 + $0xa0] sm:$0xff] %vm515, %v2077
      %2110 = vst.msk [vmem:[#allocation4 + $0xa8] sm:$0xff] %vm515, %v2078
      %2111 = vst.msk [vmem:[#allocation4 + $0xb0] sm:$0xff] %vm515, %v2079
      %2112 = vst.msk [vmem:[#allocation4 + $0xb8] sm:$0xff] %vm515, %v2080
      %2113 = vst.msk [vmem:[#allocation4 + $0xc0] sm:$0xff] %vm515, %v2081
      %2114 = vst.msk [vmem:[#allocation4 + $0xc8] sm:$0xff] %vm515, %v2082
      %2115 = vst.msk [vmem:[#allocation4 + $0xd0] sm:$0xff] %vm515, %v2083
      %2116 = vst.msk [vmem:[#allocation4 + $0xd8] sm:$0xff] %vm515, %v2084
      %2117 = vst.msk [vmem:[#allocation4 + $0xe0] sm:$0xff] %vm515, %v2085
      %2118 = vst.msk [vmem:[#allocation4 + $0xe8] sm:$0xff] %vm515, %v2086
      %2119 = vst.msk [vmem:[#allocation4 + $0xf0] sm:$0xff] %vm515, %v2087
      %2120 = vst.msk [vmem:[#allocation4 + $0xf8] sm:$0xff] %vm515, %v2088
      %2121 = vst.msk [vmem:[#allocation2] sm:$0xff] %vm1494, %v950
      %2122 = vst.msk [vmem:[#allocation2 + $0x8] sm:$0xff] %vm1494, %v951
      %2123 = vst.msk [vmem:[#allocation2 + $0x10] sm:$0xff] %vm1494, %v952
      %2124 = vst.msk [vmem:[#allocation2 + $0x18] sm:$0xff] %vm1494, %v953
      %2125 = vst.msk [vmem:[#allocation2 + $0x20] sm:$0xff] %vm1494, %v954
      %2126 = vst.msk [vmem:[#allocation2 + $0x28] sm:$0xff] %vm1494, %v955
      %2127 = vst.msk [vmem:[#allocation2 + $0x30] sm:$0xff] %vm1494, %v956
      %2128 = vst.msk [vmem:[#allocation2 + $0x38] sm:$0xff] %vm1494, %v957
      %2129 = vst.msk [vmem:[#allocation2 + $0x40] sm:$0xff] %vm1494, %v958
      %2130 = vst.msk [vmem:[#allocation2 + $0x48] sm:$0xff] %vm1494, %v959
      %2131 = vst.msk [vmem:[#allocation2 + $0x50] sm:$0xff] %vm1494, %v960
      %2132 = vst.msk [vmem:[#allocation2 + $0x58] sm:$0xff] %vm1494, %v961
      %2133 = vst.msk [vmem:[#allocation2 + $0x60] sm:$0xff] %vm1494, %v962
      %2134 = vst.msk [vmem:[#allocation2 + $0x68] sm:$0xff] %vm1494, %v963
      %2135 = vst.msk [vmem:[#allocation2 + $0x70] sm:$0xff] %vm1494, %v964
      %2136 = vst.msk [vmem:[#allocation2 + $0x78] sm:$0xff] %vm1494, %v965
      %2137 = vst.msk [vmem:[#allocation2 + $0x80] sm:$0xff] %vm1494, %v966
      %2138 = vst.msk [vmem:[#allocation2 + $0x88] sm:$0xff] %vm1494, %v967
      %2139 = vst.msk [vmem:[#allocation2 + $0x90] sm:$0xff] %vm1494, %v968
      %2140 = vst.msk [vmem:[#allocation2 + $0x98] sm:$0xff] %vm1494, %v969
      %2141 = vst.msk [vmem:[#allocation2 + $0xa0] sm:$0xff] %vm1494, %v970
      %2142 = vst.msk [vmem:[#allocation2 + $0xa8] sm:$0xff] %vm1494, %v971
      %2143 = vst.msk [vmem:[#allocation2 + $0xb0] sm:$0xff] %vm1494, %v972
      %2144 = vst.msk [vmem:[#allocation2 + $0xb8] sm:$0xff] %vm1494, %v973
      %2145 = vst.msk [vmem:[#allocation2 + $0xc0] sm:$0xff] %vm1494, %v974
      %2146 = vst.msk [vmem:[#allocation2 + $0xc8] sm:$0xff] %vm1494, %v975
      %2147 = vst.msk [vmem:[#allocation2 + $0xd0] sm:$0xff] %vm1494, %v976
      %2148 = vst.msk [vmem:[#allocation2 + $0xd8] sm:$0xff] %vm1494, %v977
      %2149 = vst.msk [vmem:[#allocation2 + $0xe0] sm:$0xff] %vm1494, %v978
      %2150 = vst.msk [vmem:[#allocation2 + $0xe8] sm:$0xff] %vm1494, %v979
      %2151 = vst.msk [vmem:[#allocation2 + $0xf0] sm:$0xff] %vm1494, %v980
      %2152 = vst.msk [vmem:[#allocation2 + $0xf8] sm:$0xff] %vm1494, %v981
      // Predicated region
      $region37: #{tpu_custom_call.1} parent=31 // pred_check
        %p2153 = pneg %p269
      $region38: #{tpu_custom_call.1} parent=31 // pred_check_branch
        %2155 = sbr.rel (%p2153) target = $region40
      $region39: #{tpu_custom_call.1} parent=31 // pred_region
        %v2156 = vld [vmem:[#allocation3] sm:$0xff]
        %v2157 = vld [vmem:[#allocation3 + $0x8] sm:$0xff]
        %v2158 = vld [vmem:[#allocation3 + $0x10] sm:$0xff]
        %v2159 = vld [vmem:[#allocation3 + $0x18] sm:$0xff]
        %v2160 = vld [vmem:[#allocation3 + $0x20] sm:$0xff]
        %v2161 = vld [vmem:[#allocation3 + $0x28] sm:$0xff]
        %v2162 = vld [vmem:[#allocation3 + $0x30] sm:$0xff]
        %v2163 = vld [vmem:[#allocation3 + $0x38] sm:$0xff]
        %v2164 = vld [vmem:[#allocation3 + $0x40] sm:$0xff]
        %v2165 = vld [vmem:[#allocation3 + $0x48] sm:$0xff]
        %v2166 = vld [vmem:[#allocation3 + $0x50] sm:$0xff]
        %v2167 = vld [vmem:[#allocation3 + $0x58] sm:$0xff]
        %v2168 = vld [vmem:[#allocation3 + $0x60] sm:$0xff]
        %v2169 = vld [vmem:[#allocation3 + $0x68] sm:$0xff]
        %v2170 = vld [vmem:[#allocation3 + $0x70] sm:$0xff]
        %v2171 = vld [vmem:[#allocation3 + $0x78] sm:$0xff]
        %v2172 = vld [vmem:[#allocation3 + $0x80] sm:$0xff]
        %v2173 = vld [vmem:[#allocation3 + $0x88] sm:$0xff]
        %v2174 = vld [vmem:[#allocation3 + $0x90] sm:$0xff]
        %v2175 = vld [vmem:[#allocation3 + $0x98] sm:$0xff]
        %v2176 = vld [vmem:[#allocation3 + $0xa0] sm:$0xff]
        %v2177 = vld [vmem:[#allocation3 + $0xa8] sm:$0xff]
        %v2178 = vld [vmem:[#allocation3 + $0xb0] sm:$0xff]
        %v2179 = vld [vmem:[#allocation3 + $0xb8] sm:$0xff]
        %v2180 = vld [vmem:[#allocation3 + $0xc0] sm:$0xff]
        %v2181 = vld [vmem:[#allocation3 + $0xc8] sm:$0xff]
        %v2182 = vld [vmem:[#allocation3 + $0xd0] sm:$0xff]
        %v2183 = vld [vmem:[#allocation3 + $0xd8] sm:$0xff]
        %v2184 = vld [vmem:[#allocation3 + $0xe0] sm:$0xff]
        %v2185 = vld [vmem:[#allocation3 + $0xe8] sm:$0xff]
        %v2186 = vld [vmem:[#allocation3 + $0xf0] sm:$0xff]
        %v2187 = vld [vmem:[#allocation3 + $0xf8] sm:$0xff]
        %v2188 = vrcp.pop %v2156
        %v2189 = vrcp.pop %v2157
        %v2190 = vrcp.pop %v2158
        %v2191 = vrcp.pop %v2159
        %v2192 = vrcp.pop %v2160
        %v2193 = vrcp.pop %v2161
        %v2194 = vrcp.pop %v2162
        %v2195 = vrcp.pop %v2163
        %v2196 = vrcp.pop %v2164
        %v2197 = vrcp.pop %v2165
        %v2198 = vrcp.pop %v2166
        %v2199 = vrcp.pop %v2167
        %v2200 = vrcp.pop %v2168
        %v2201 = vrcp.pop %v2169
        %v2202 = vrcp.pop %v2170
        %v2203 = vrcp.pop %v2171
        %v2204 = vrcp.pop %v2172
        %v2205 = vrcp.pop %v2173
        %v2206 = vrcp.pop %v2174
        %v2207 = vrcp.pop %v2175
        %v2208 = vrcp.pop %v2176
        %v2209 = vrcp.pop %v2177
        %v2210 = vrcp.pop %v2178
        %v2211 = vrcp.pop %v2179
        %v2212 = vrcp.pop %v2180
        %v2213 = vrcp.pop %v2181
        %v2214 = vrcp.pop %v2182
        %v2215 = vrcp.pop %v2183
        %v2216 = vrcp.pop %v2184
        %v2217 = vrcp.pop %v2185
        %v2218 = vrcp.pop %v2186
        %v2219 = vrcp.pop %v2187
        %v2220 = vld [vmem:[#allocation4] sm:$0xff]
        %v2221 = vld [vmem:[#allocation4 + $0x8] sm:$0xff]
        %v2222 = vld [vmem:[#allocation4 + $0x10] sm:$0xff]
        %v2223 = vld [vmem:[#allocation4 + $0x18] sm:$0xff]
        %v2224 = vld [vmem:[#allocation4 + $0x20] sm:$0xff]
        %v2225 = vld [vmem:[#allocation4 + $0x28] sm:$0xff]
        %v2226 = vld [vmem:[#allocation4 + $0x30] sm:$0xff]
        %v2227 = vld [vmem:[#allocation4 + $0x38] sm:$0xff]
        %v2228 = vld [vmem:[#allocation4 + $0x40] sm:$0xff]
        %v2229 = vld [vmem:[#allocation4 + $0x48] sm:$0xff]
        %v2230 = vld [vmem:[#allocation4 + $0x50] sm:$0xff]
        %v2231 = vld [vmem:[#allocation4 + $0x58] sm:$0xff]
        %v2232 = vld [vmem:[#allocation4 + $0x60] sm:$0xff]
        %v2233 = vld [vmem:[#allocation4 + $0x68] sm:$0xff]
        %v2234 = vld [vmem:[#allocation4 + $0x70] sm:$0xff]
        %v2235 = vld [vmem:[#allocation4 + $0x78] sm:$0xff]
        %v2236 = vld [vmem:[#allocation4 + $0x80] sm:$0xff]
        %v2237 = vld [vmem:[#allocation4 + $0x88] sm:$0xff]
        %v2238 = vld [vmem:[#allocation4 + $0x90] sm:$0xff]
        %v2239 = vld [vmem:[#allocation4 + $0x98] sm:$0xff]
        %v2240 = vld [vmem:[#allocation4 + $0xa0] sm:$0xff]
        %v2241 = vld [vmem:[#allocation4 + $0xa8] sm:$0xff]
        %v2242 = vld [vmem:[#allocation4 + $0xb0] sm:$0xff]
        %v2243 = vld [vmem:[#allocation4 + $0xb8] sm:$0xff]
        %v2244 = vld [vmem:[#allocation4 + $0xc0] sm:$0xff]
        %v2245 = vld [vmem:[#allocation4 + $0xc8] sm:$0xff]
        %v2246 = vld [vmem:[#allocation4 + $0xd0] sm:$0xff]
        %v2247 = vld [vmem:[#allocation4 + $0xd8] sm:$0xff]
        %v2248 = vld [vmem:[#allocation4 + $0xe0] sm:$0xff]
        %v2249 = vld [vmem:[#allocation4 + $0xe8] sm:$0xff]
        %v2250 = vld [vmem:[#allocation4 + $0xf0] sm:$0xff]
        %v2251 = vld [vmem:[#allocation4 + $0xf8] sm:$0xff]
        %2253 = vset.pattern.permute.xlu0 0
        %2254 = vperm.xlu0 %2253, %v2188
        %v2255 = vpop.permute.xlu0 %2254
        %2258 = vset.pattern.permute.xlu0 0
        %2259 = vperm.xlu0 %2258, %v2189
        %v2260 = vpop.permute.xlu0 %2259
        %2263 = vset.pattern.permute.xlu0 0
        %2264 = vperm.xlu0 %2263, %v2190
        %v2265 = vpop.permute.xlu0 %2264
        %2268 = vset.pattern.permute.xlu0 0
        %2269 = vperm.xlu0 %2268, %v2191
        %v2270 = vpop.permute.xlu0 %2269
        %2273 = vset.pattern.permute.xlu0 0
        %2274 = vperm.xlu0 %2273, %v2192
        %v2275 = vpop.permute.xlu0 %2274
        %2278 = vset.pattern.permute.xlu0 0
        %2279 = vperm.xlu0 %2278, %v2193
        %v2280 = vpop.permute.xlu0 %2279
        %2283 = vset.pattern.permute.xlu0 0
        %2284 = vperm.xlu0 %2283, %v2194
        %v2285 = vpop.permute.xlu0 %2284
        %2288 = vset.pattern.permute.xlu0 0
        %2289 = vperm.xlu0 %2288, %v2195
        %v2290 = vpop.permute.xlu0 %2289
        %2293 = vset.pattern.permute.xlu0 0
        %2294 = vperm.xlu0 %2293, %v2196
        %v2295 = vpop.permute.xlu0 %2294
        %2298 = vset.pattern.permute.xlu0 0
        %2299 = vperm.xlu0 %2298, %v2197
        %v2300 = vpop.permute.xlu0 %2299
        %2303 = vset.pattern.permute.xlu0 0
        %2304 = vperm.xlu0 %2303, %v2198
        %v2305 = vpop.permute.xlu0 %2304
        %2308 = vset.pattern.permute.xlu0 0
        %2309 = vperm.xlu0 %2308, %v2199
        %v2310 = vpop.permute.xlu0 %2309
        %2313 = vset.pattern.permute.xlu0 0
        %2314 = vperm.xlu0 %2313, %v2200
        %v2315 = vpop.permute.xlu0 %2314
        %2318 = vset.pattern.permute.xlu0 0
        %2319 = vperm.xlu0 %2318, %v2201
        %v2320 = vpop.permute.xlu0 %2319
        %2323 = vset.pattern.permute.xlu0 0
        %2324 = vperm.xlu0 %2323, %v2202
        %v2325 = vpop.permute.xlu0 %2324
        %2328 = vset.pattern.permute.xlu0 0
        %2329 = vperm.xlu0 %2328, %v2203
        %v2330 = vpop.permute.xlu0 %2329
        %2333 = vset.pattern.permute.xlu0 0
        %2334 = vperm.xlu0 %2333, %v2204
        %v2335 = vpop.permute.xlu0 %2334
        %2338 = vset.pattern.permute.xlu0 0
        %2339 = vperm.xlu0 %2338, %v2205
        %v2340 = vpop.permute.xlu0 %2339
        %2343 = vset.pattern.permute.xlu0 0
        %2344 = vperm.xlu0 %2343, %v2206
        %v2345 = vpop.permute.xlu0 %2344
        %2348 = vset.pattern.permute.xlu0 0
        %2349 = vperm.xlu0 %2348, %v2207
        %v2350 = vpop.permute.xlu0 %2349
        %2353 = vset.pattern.permute.xlu0 0
        %2354 = vperm.xlu0 %2353, %v2208
        %v2355 = vpop.permute.xlu0 %2354
        %2358 = vset.pattern.permute.xlu0 0
        %2359 = vperm.xlu0 %2358, %v2209
        %v2360 = vpop.permute.xlu0 %2359
        %2363 = vset.pattern.permute.xlu0 0
        %2364 = vperm.xlu0 %2363, %v2210
        %v2365 = vpop.permute.xlu0 %2364
        %2368 = vset.pattern.permute.xlu0 0
        %2369 = vperm.xlu0 %2368, %v2211
        %v2370 = vpop.permute.xlu0 %2369
        %2373 = vset.pattern.permute.xlu0 0
        %2374 = vperm.xlu0 %2373, %v2212
        %v2375 = vpop.permute.xlu0 %2374
        %2378 = vset.pattern.permute.xlu0 0
        %2379 = vperm.xlu0 %2378, %v2213
        %v2380 = vpop.permute.xlu0 %2379
        %2383 = vset.pattern.permute.xlu0 0
        %2384 = vperm.xlu0 %2383, %v2214
        %v2385 = vpop.permute.xlu0 %2384
        %2388 = vset.pattern.permute.xlu0 0
        %2389 = vperm.xlu0 %2388, %v2215
        %v2390 = vpop.permute.xlu0 %2389
        %2393 = vset.pattern.permute.xlu0 0
        %2394 = vperm.xlu0 %2393, %v2216
        %v2395 = vpop.permute.xlu0 %2394
        %2398 = vset.pattern.permute.xlu0 0
        %2399 = vperm.xlu0 %2398, %v2217
        %v2400 = vpop.permute.xlu0 %2399
        %2403 = vset.pattern.permute.xlu0 0
        %2404 = vperm.xlu0 %2403, %v2218
        %v2405 = vpop.permute.xlu0 %2404
        %2408 = vset.pattern.permute.xlu0 0
        %2409 = vperm.xlu0 %2408, %v2219
        %v2410 = vpop.permute.xlu0 %2409
        %v2412 = vmul.f32 %v2220, %v2255
        %v2413 = vmul.f32 %v2221, %v2260
        %v2414 = vmul.f32 %v2222, %v2265
        %v2415 = vmul.f32 %v2223, %v2270
        %v2416 = vmul.f32 %v2224, %v2275
        %v2417 = vmul.f32 %v2225, %v2280
        %v2418 = vmul.f32 %v2226, %v2285
        %v2419 = vmul.f32 %v2227, %v2290
        %v2420 = vmul.f32 %v2228, %v2295
        %v2421 = vmul.f32 %v2229, %v2300
        %v2422 = vmul.f32 %v2230, %v2305
        %v2423 = vmul.f32 %v2231, %v2310
        %v2424 = vmul.f32 %v2232, %v2315
        %v2425 = vmul.f32 %v2233, %v2320
        %v2426 = vmul.f32 %v2234, %v2325
        %v2427 = vmul.f32 %v2235, %v2330
        %v2428 = vmul.f32 %v2236, %v2335
        %v2429 = vmul.f32 %v2237, %v2340
        %v2430 = vmul.f32 %v2238, %v2345
        %v2431 = vmul.f32 %v2239, %v2350
        %v2432 = vmul.f32 %v2240, %v2355
        %v2433 = vmul.f32 %v2241, %v2360
        %v2434 = vmul.f32 %v2242, %v2365
        %v2435 = vmul.f32 %v2243, %v2370
        %v2436 = vmul.f32 %v2244, %v2375
        %v2437 = vmul.f32 %v2245, %v2380
        %v2438 = vmul.f32 %v2246, %v2385
        %v2439 = vmul.f32 %v2247, %v2390
        %v2440 = vmul.f32 %v2248, %v2395
        %v2441 = vmul.f32 %v2249, %v2400
        %v2442 = vmul.f32 %v2250, %v2405
        %v2443 = vmul.f32 %v2251, %v2410
        %2444 = vst.msk [vmem:[%s266] sm:$0xff] %vm515, %v2412
        %2445 = vst.msk [vmem:[%s266 + $0x8] sm:$0xff] %vm515, %v2413
        %2446 = vst.msk [vmem:[%s266 + $0x10] sm:$0xff] %vm515, %v2414
        %2447 = vst.msk [vmem:[%s266 + $0x18] sm:$0xff] %vm515, %v2415
        %2448 = vst.msk [vmem:[%s266 + $0x20] sm:$0xff] %vm515, %v2416
        %2449 = vst.msk [vmem:[%s266 + $0x28] sm:$0xff] %vm515, %v2417
        %2450 = vst.msk [vmem:[%s266 + $0x30] sm:$0xff] %vm515, %v2418
        %2451 = vst.msk [vmem:[%s266 + $0x38] sm:$0xff] %vm515, %v2419
        %2452 = vst.msk [vmem:[%s266 + $0x40] sm:$0xff] %vm515, %v2420
        %2453 = vst.msk [vmem:[%s266 + $0x48] sm:$0xff] %vm515, %v2421
        %2454 = vst.msk [vmem:[%s266 + $0x50] sm:$0xff] %vm515, %v2422
        %2455 = vst.msk [vmem:[%s266 + $0x58] sm:$0xff] %vm515, %v2423
        %2456 = vst.msk [vmem:[%s266 + $0x60] sm:$0xff] %vm515, %v2424
        %2457 = vst.msk [vmem:[%s266 + $0x68] sm:$0xff] %vm515, %v2425
        %2458 = vst.msk [vmem:[%s266 + $0x70] sm:$0xff] %vm515, %v2426
        %2459 = vst.msk [vmem:[%s266 + $0x78] sm:$0xff] %vm515, %v2427
        %2460 = vst.msk [vmem:[%s266 + $0x80] sm:$0xff] %vm515, %v2428
        %2461 = vst.msk [vmem:[%s266 + $0x88] sm:$0xff] %vm515, %v2429
        %2462 = vst.msk [vmem:[%s266 + $0x90] sm:$0xff] %vm515, %v2430
        %2463 = vst.msk [vmem:[%s266 + $0x98] sm:$0xff] %vm515, %v2431
        %2464 = vst.msk [vmem:[%s266 + $0xa0] sm:$0xff] %vm515, %v2432
        %2465 = vst.msk [vmem:[%s266 + $0xa8] sm:$0xff] %vm515, %v2433
        %2466 = vst.msk [vmem:[%s266 + $0xb0] sm:$0xff] %vm515, %v2434
        %2467 = vst.msk [vmem:[%s266 + $0xb8] sm:$0xff] %vm515, %v2435
        %2468 = vst.msk [vmem:[%s266 + $0xc0] sm:$0xff] %vm515, %v2436
        %2469 = vst.msk [vmem:[%s266 + $0xc8] sm:$0xff] %vm515, %v2437
        %2470 = vst.msk [vmem:[%s266 + $0xd0] sm:$0xff] %vm515, %v2438
        %2471 = vst.msk [vmem:[%s266 + $0xd8] sm:$0xff] %vm515, %v2439
        %2472 = vst.msk [vmem:[%s266 + $0xe0] sm:$0xff] %vm515, %v2440
        %2473 = vst.msk [vmem:[%s266 + $0xe8] sm:$0xff] %vm515, %v2441
        %2474 = vst.msk [vmem:[%s266 + $0xf0] sm:$0xff] %vm515, %v2442
        %2475 = vst.msk [vmem:[%s266 + $0xf8] sm:$0xff] %vm515, %v2443
      $region40: #{tpu_custom_call.1} parent=31 // pred_fallthru
        _
      %s2476 = smul.u32 2, %s18
      %p2477 = scmp.lt.s32.totalorder %s2476, 3
      %s2478 = scalar_select %p2477, %s2476, 3
      %s2479 = smul.addr %s2478, 16
      %s2480 = smul.addr %s2479, 8
      %s2481 = scalar_lea.vmem %s3, %s2480
      // Predicated region
      $region41: #{tpu_custom_call.1} parent=31 // pred_check
        %p2482 = pneg %p126
      $region42: #{tpu_custom_call.1} parent=31 // pred_check_branch
        %2484 = sbr.rel (%p2482) target = $region44
      $region43: #{tpu_custom_call.1} parent=31 // pred_region
        %s2485 = smul.u32 2, %s18
      $region44: #{tpu_custom_call.1} parent=31 // pred_fallthru
        _
    $region32: #{tpu_custom_call.1} parent=5 // pred_fallthru
      _
    %p2486 = scmp.le.s32.totalorder 2, %s9
    // Predicated region
    $region45: #{tpu_custom_call.1} parent=5 // pred_check
      %p2487 = pneg %p2486
    $region46: #{tpu_custom_call.1} parent=5 // pred_check_branch
      %2489 = sbr.rel (%p2487) target = $region48
    $region47: #{tpu_custom_call.1} parent=5 // pred_region
      %s2490 = ssub.s32 %s9, 2
      // Predicated region
      $region49: #{tpu_custom_call.1} parent=47 // pred_check
        %p2491 = pneg %p132
      $region50: #{tpu_custom_call.1} parent=47 // pred_check_branch
        %2493 = sbr.rel (%p2491) target = $region52
      $region51: #{tpu_custom_call.1} parent=47 // pred_region
        %s2494 = smul.u32 2, %s20
        %p2495 = scmp.lt.s32.totalorder %s2494, 3
        %s2496 = scalar_select %p2495, %s2494, 3
        %s2497 = smul.addr %s2496, 16
        %s2498 = smul.addr %s2497, 8
        %s2499 = scalar_lea.vmem %s3, %s2498
      $region52: #{tpu_custom_call.1} parent=47 // pred_fallthru
        _
    $region48: #{tpu_custom_call.1} parent=5 // pred_fallthru
      _
  $region6: #{tpu_custom_call.1} parent=0 // loop_footer
    %s13 = sadd.s32 1, %s9
  $region7: #{tpu_custom_call.1} parent=0 // loop_footer_branch
    %8 = sbr.rel target = $region3
  $region8: #{tpu_custom_call.1} parent=0 // loop_exit
    _

</llo_original>
